<compile_context>
chip_gen: v6e
topology: v6e:2x2x1
jax: 0.10.0
libtpu: 0.0.40
codegen_flags: <defaults>
</compile_context>

<pallas_src>
import jax
import jax.numpy as jnp
from jax.experimental import pallas as pl
from jax.experimental.pallas import tpu as pltpu

BN_EPS = 1e-4
_VMEM_LIMIT_BYTES = 48 * 1024 * 1024     # > 16/32 MiB scoped defaults, < v7x 64 MiB physical
_STREAM_BUDGET_BYTES = 28 * 1024 * 1024  # cap for kernel-2's double-buffered f32 in + f32 out


def _pick_l_tile(C, L):
    """Largest lane tile whose kernel-2 streaming working set fits the VMEM budget."""
    for t in (2048, 1024, 512, 256, 128):
        if L % t == 0 and 2 * (C * t * 4 + C * t * 4) <= _STREAM_BUDGET_BYTES:
            return t
    # TODO(synk): pad L to a multiple of 128 instead of using one (possibly huge) block.
    return L


# ----------------------------------------------------------------------------
# Wrapper + kernels
# ----------------------------------------------------------------------------
def glore_unit_pallas(x_nchw, params, *, l_tile=None):
    f32, bf16 = jnp.float32, jnp.bfloat16
    N, C, H, W = x_nchw.shape
    L = H * W
    S = params["ws"].shape[0]          # num_s
    K = params["wp"].shape[0]          # num_n
    SK1 = S + K + 1

    # NCHW -> (N, C, L): channels-first, free reshape; L is the lane dimension.
    x_ncl = x_nchw.reshape(N, C, L).astype(f32)

    if l_tile is None:
        l_tile = _pick_l_tile(C, L)
    lt = L // l_tile

    # --- trace-time weight preprocessing -------------------------------------
    # conv_state + conv_proj fused into one weight; appended zero-row with bias=1
    # makes row S+K of the projection identically 1.0 (exact in bf16), so the
    # combined lane-contraction also yields sum_l xp.
    wsp_aug = jnp.concatenate(
        [params["ws"], params["wp"], jnp.zeros((1, C), f32)], axis=0).astype(bf16)  # (SK1, C)
    bsp_aug = jnp.concatenate(
        [params["bs"], params["bp"], jnp.ones((1,), f32)]).reshape(SK1, 1).astype(f32)
    wp16 = params["wp"].astype(bf16)                                                # (K, C)
    bp = params["bp"].reshape(K, 1).astype(f32)

    # --- kernel 1: fused projections + graph-space reductions ----------------
    def proj_reduce_kernel(x_ref, wsp_ref, bsp_ref, m_ref):
        x16 = x_ref[0].astype(bf16)                                           # (C, TL)
        xsp = jnp.dot(wsp_ref[...], x16, preferred_element_type=f32) + bsp_ref[...]
        xsp16 = xsp.astype(bf16)                                              # (SK1, TL)
        xp16 = xsp16[S:S + K, :]                                              # (K, TL)
        nt = (((1,), (1,)), ((), ()))            # contract the minor/lane (L) dimension
        m_ref[0, 0] = jax.lax.dot_general(xsp16, xp16, nt, preferred_element_type=f32)

    parts = pl.pallas_call(
        proj_reduce_kernel,
        grid=(N, lt),
        in_specs=[
            pl.BlockSpec((1, C, l_tile), lambda b, l: (b, 0, l)),             # x
            pl.BlockSpec((SK1, C), lambda b, l: (0, 0)),                      # fused proj w
            pl.BlockSpec((SK1, 1), lambda b, l: (0, 0)),                      # fused proj b
        ],
        out_specs=pl.BlockSpec((1, 1, SK1, K), lambda b, l: (b, l, 0, 0)),    # per-tile partial
        out_shape=jax.ShapeDtypeStruct((N, lt, SK1, K), f32),
        compiler_params=pltpu.CompilerParams(
            dimension_semantics=("parallel", "parallel"),
            vmem_limit_bytes=_VMEM_LIMIT_BYTES),
    )(x_ncl, wsp_aug, bsp_aug)

    # --- tiny per-batch math in plain JAX (GCN + BN statistics) --------------
    hi = "highest"
    M = jnp.sum(parts, axis=1)                   # (N, SK1, K): sum L-tile partials
    xns = M[:, :S, :]                            # (N, S, K)  = xs @ xp^T
    G = M[:, S:S + K, :]                         # (N, K, K)  = xp @ xp^T
    sxp = M[:, S + K, :]                         # (N, K)     = sum_l xp

    # GCN (interact='graph'); "h + x" residual folded into (w1 + I)^T,
    # conv_extend pre-multiplied by gcn.conv2 at trace time.
    w1t = (params["w1"] + jnp.eye(K, dtype=f32)).T
    h = jnp.einsum("nsk,kj->nsj", xns, w1t, precision=hi) + params["b1"][None, None, :]
    h = jnp.maximum(h, 0.0)
    wext_w2 = jnp.einsum("cs,st->ct", params["wext"], params["w2"], precision=hi)   # (C, S)
    weff = jnp.einsum("ct,ntk->nck", wext_w2, h, precision=hi)                      # (N, C, K)

    # BatchNorm batch statistics of y = weff @ xp without materializing y:
    #   sum_l y   = weff @ sum_l xp ,  sum_l y^2 = weff G weff^T (diagonal).
    cnt = jnp.float32(N * L)
    ysum = jnp.einsum("nck,nk->c", weff, sxp, precision=hi)
    ysq = jnp.einsum("nck,nkj,ncj->c", weff, G, weff, precision=hi)
    mean = ysum / cnt
    var = jnp.maximum(ysq / cnt - mean * mean, 0.0)       # biased batch variance, clamped
    inv = jax.lax.rsqrt(var + BN_EPS)
    scale = params["gamma"] * inv
    shift = (params["beta"] - mean * scale).reshape(C, 1).astype(f32)
    weff_s16 = (weff * scale[None, :, None]).astype(bf16)  # BN scale folded into weff

    # --- kernel 2: recompute xp, fused back-projection + BN + residual -------
    def bn_residual_kernel(x_ref, wp_ref, bp_ref, weff_ref, shift_ref, o_ref):
        x = x_ref[0]                                                          # (C, TL) f32
        xp = jnp.dot(wp_ref[...], x.astype(bf16), preferred_element_type=f32) + bp_ref[...]
        y = jnp.dot(weff_ref[0], xp.astype(bf16), preferred_element_type=f32)  # (C, TL)
        o_ref[0] = (x + y + shift_ref[...]).astype(o_ref.dtype)

    out = pl.pallas_call(
        bn_residual_kernel,
        grid=(N, lt),
        in_specs=[
            pl.BlockSpec((1, C, l_tile), lambda b, l: (b, 0, l)),             # x (residual)
            pl.BlockSpec((K, C), lambda b, l: (0, 0)),                        # conv_proj w
            pl.BlockSpec((K, 1), lambda b, l: (0, 0)),                        # conv_proj b
            pl.BlockSpec((1, C, K), lambda b, l: (b, 0, 0)),                  # weff * BN scale
            pl.BlockSpec((C, 1), lambda b, l: (0, 0)),                        # BN shift
        ],
        out_specs=pl.BlockSpec((1, C, l_tile), lambda b, l: (b, 0, l)),
        out_shape=jax.ShapeDtypeStruct((N, C, L), f32),
        compiler_params=pltpu.CompilerParams(
            dimension_semantics=("parallel", "parallel"),
            vmem_limit_bytes=_VMEM_LIMIT_BYTES),
    )(x_ncl, wp16, bp, weff_s16, shift)

    return out.reshape(N, C, H, W)


# ----------------------------------------------------------------------------
# References
# ----------------------------------------------------------------------------
def glore_unit_ref_f32(x_nchw, p, eps=BN_EPS):
    """Pure-JAX float32 reference mirroring the PyTorch forward."""
    N, C, H, W = x_nchw.shape
    L = H * W
    with jax.default_matmul_precision("float32"):
        xr = x_nchw.reshape(N, C, L)
        xs = jnp.einsum("sc,ncl->nsl", p["ws"], xr) + p["bs"][None, :, None]
        xp = jnp.einsum("kc,ncl->nkl", p["wp"], xr) + p["bp"][None, :, None]
        xns = jnp.einsum("nsl,nkl->nsk", xs, xp)
        h = jnp.einsum("jk,nsk->nsj", p["w1"], xns) + p["b1"][None, None, :]
        h = jnp.maximum(h + xns, 0.0)
        h = jnp.einsum("st,ntk->nsk", p["w2"], h)
        xstate = jnp.einsum("nsk,nkl->nsl", h, xp)
        y = jnp.einsum("cs,nsl->ncl", p["wext"], xstate)
        mean = y.mean(axis=(0, 2), keepdims=True)
        var = ((y - mean) ** 2).mean(axis=(0, 2), keepdims=True)
        yn = (y - mean) * jax.lax.rsqrt(var + eps)
        yn = yn * p["gamma"][None, :, None] + p["beta"][None, :, None]
        return x_nchw + yn.reshape(N, C, H, W)


def glore_unit_ref_mixed(x_nchw, p, eps=BN_EPS):
    """Pure-JAX reference with the same bf16-operand / f32-accumulate cast points
    as the Pallas kernels (tight numerical check)."""
    f32, bf16 = jnp.float32, jnp.bfloat16
    N, C, H, W = x_nchw.shape
    L = H * W
    K = p["wp"].shape[0]
    hi = "highest"
    x32 = x_nchw.reshape(N, C, L).astype(f32)
    x16 = x32.astype(bf16)
    xs = jnp.einsum("sc,ncl->nsl", p["ws"].astype(bf16), x16,
                    preferred_element_type=f32) + p["bs"][None, :, None]
    xp = jnp.einsum("kc,ncl->nkl", p["wp"].astype(bf16), x16,
                    preferred_element_type=f32) + p["bp"][None, :, None]
    xs16, xp16 = xs.astype(bf16), xp.astype(bf16)
    xns = jnp.einsum("nsl,nkl->nsk", xs16, xp16, preferred_element_type=f32)
    g = jnp.einsum("nkl,njl->nkj", xp16, xp16, preferred_element_type=f32)
    sxp = jnp.sum(xp16.astype(f32), axis=2)
    w1t = (p["w1"] + jnp.eye(K, dtype=f32)).T
    h = jnp.einsum("nsk,kj->nsj", xns, w1t, precision=hi) + p["b1"][None, None, :]
    h = jnp.maximum(h, 0.0)
    wext_w2 = jnp.einsum("cs,st->ct", p["wext"], p["w2"], precision=hi)
    weff = jnp.einsum("ct,ntk->nck", wext_w2, h, precision=hi)
    cnt = jnp.float32(N * L)
    ysum = jnp.einsum("nck,nk->c", weff, sxp, precision=hi)
    ysq = jnp.einsum("nck,nkj,ncj->c", weff, g, weff, precision=hi)
    mean = ysum / cnt
    var = jnp.maximum(ysq / cnt - mean * mean, 0.0)
    inv = jax.lax.rsqrt(var + eps)
    scale = p["gamma"] * inv
    shift = (p["beta"] - mean * scale)[None, :, None]
    weff_s16 = (weff * scale[None, :, None]).astype(bf16)
    y = jnp.einsum("nck,nkl->ncl", weff_s16, xp16, preferred_element_type=f32)
    return (x32 + y + shift).reshape(N, C, H, W)


def make_params(key, num_in, num_mid):
    num_s, num_n = 2 * num_mid, num_mid
    ks = jax.random.split(key, 10)
    s = 0.1
    return {
        "ws":    s * jax.random.normal(ks[0], (num_s, num_in), jnp.float32),
        "bs":    s * jax.random.normal(ks[1], (num_s,), jnp.float32),
        "wp":    s * jax.random.normal(ks[2], (num_n, num_in), jnp.float32),
        "bp":    s * jax.random.normal(ks[3], (num_n,), jnp.float32),
        "w1":    s * jax.random.normal(ks[4], (num_n, num_n), jnp.float32),
        "b1":    s * jax.random.normal(ks[5], (num_n,), jnp.float32),
        "w2":    s * jax.random.normal(ks[6], (num_s, num_s), jnp.float32),
        "wext":  s * jax.random.normal(ks[7], (num_in, num_s), jnp.float32),
        "gamma": 1.0 + s * jax.random.normal(ks[8], (num_in,), jnp.float32),
        "beta":  s * jax.random.normal(ks[9], (num_in,), jnp.float32),
    }


if __name__ == "__main__":
    num_in, num_mid = 16, 8          # -> num_s = 16, num_n = 8
    N, H, W = 2, 32, 32              # L = 1024 -> a single 1024-wide lane tile

    key = jax.random.PRNGKey(0)
    kx, kp = jax.random.split(key)
    x = jax.random.normal(kx, (N, num_in, H, W), jnp.float32)
    params = make_params(kp, num_in, num_mid)

    out = jax.block_until_ready(jax.jit(glore_unit_pallas)(x, params))
    assert out.shape == x.shape

    ref_mixed = glore_unit_ref_mixed(x, params)
    ref_f32 = glore_unit_ref_f32(x, params)
    err_mixed = float(jnp.max(jnp.abs(out - ref_mixed)))
    err_f32 = float(jnp.max(jnp.abs(out - ref_f32)))

    # Tight check vs a reference with identical bf16/f32 cast points.
    assert jnp.allclose(out, ref_mixed, atol=3e-3, rtol=3e-3), \
        f"mixed-precision reference mismatch: max abs err {err_mixed}"
    # Sanity check vs the strict f32 PyTorch-semantics reference (tolerance only
    # reflects the intentional bf16 MXU operands in the kernels).
    assert jnp.allclose(out, ref_f32, atol=0.2, rtol=0.05), \
        f"float32 reference mismatch: max abs err {err_f32}"
    print("KERNEL_OK")
</pallas_src>

<mosaic_0001>
module attributes {stable_mosaic.version = 11 : i64} {
  func.func @proj_reduce_kernel(%arg0: i32, %arg1: i32, %arg2: memref<1x16x1024xf32, #tpu.memory_space<vmem>>, %arg3: memref<25x16xbf16, #tpu.memory_space<vmem>>, %arg4: memref<25x1xf32, #tpu.memory_space<vmem>>, %arg5: memref<1x1x25x8xf32, #tpu.memory_space<vmem>>) attributes {dimension_semantics = [#tpu.dimension_semantics<parallel>, #tpu.dimension_semantics<parallel>], iteration_bounds = array<i64: 2, 1>, scalar_prefetch = 0 : i64, scratch_operands = 0 : i64, tpu.core_type = #tpu.core_type<tc>, window_params = [{transform_indices = @transform_0, window_bounds = array<i64: 1, 16, 1024>}, {pipeline_mode = #tpu.pipeline_mode<synchronous>, transform_indices = @transform_1, window_bounds = array<i64: 25, 16>}, {pipeline_mode = #tpu.pipeline_mode<synchronous>, transform_indices = @transform_2, window_bounds = array<i64: 25, 1>}, {transform_indices = @transform_3, window_bounds = array<i64: 1, 1, 25, 8>}]} {
    %c0 = arith.constant 0 : index
    %c0_0 = arith.constant 0 : index
    %c0_1 = arith.constant 0 : index
    %0 = vector.load %arg2[%c0, %c0_0, %c0_1] : memref<1x16x1024xf32, #tpu.memory_space<vmem>>, vector<1x16x1024xf32>
    %1 = vector.shape_cast %0 : vector<1x16x1024xf32> to vector<16x1024xf32>
    %2 = arith.truncf %1 : vector<16x1024xf32> to vector<16x1024xbf16>
    %c0_2 = arith.constant 0 : index
    %c0_3 = arith.constant 0 : index
    %3 = vector.load %arg3[%c0_2, %c0_3] : memref<25x16xbf16, #tpu.memory_space<vmem>>, vector<25x16xbf16>
    %cst = arith.constant dense<0.000000e+00> : vector<25x1024xf32>
    %4 = tpu.matmul %3, %2, %cst {dimension_numbers = #tpu.dot_dimension_numbers<[1], [0], [0], [1], [0, 0, 1, 1], [], []>} : vector<25x16xbf16>, vector<16x1024xbf16>, vector<25x1024xf32> -> vector<25x1024xf32>
    %c0_4 = arith.constant 0 : index
    %c0_5 = arith.constant 0 : index
    %5 = vector.load %arg4[%c0_4, %c0_5] : memref<25x1xf32, #tpu.memory_space<vmem>>, vector<25x1xf32>
    %6 = vector.broadcast %5 : vector<25x1xf32> to vector<25x1024xf32>
    %7 = arith.addf %4, %6 : vector<25x1024xf32>
    %8 = arith.truncf %7 : vector<25x1024xf32> to vector<25x1024xbf16>
    %9 = vector.extract_strided_slice %8 {offsets = [16, 0], sizes = [8, 1024], strides = [1, 1]} : vector<25x1024xbf16> to vector<8x1024xbf16>
    %cst_6 = arith.constant dense<0.000000e+00> : vector<25x8xf32>
    %10 = tpu.matmul %8, %9, %cst_6 {dimension_numbers = #tpu.dot_dimension_numbers<[1], [1], [0], [0], [0, 0, 1, 0], [], []>} : vector<25x1024xbf16>, vector<8x1024xbf16>, vector<25x8xf32> -> vector<25x8xf32>
    %c0_7 = arith.constant 0 : index
    %c0_8 = arith.constant 0 : index
    %c0_9 = arith.constant 0 : index
    %c0_10 = arith.constant 0 : index
    %11 = vector.load %arg5[%c0_7, %c0_8, %c0_9, %c0_10] : memref<1x1x25x8xf32, #tpu.memory_space<vmem>>, vector<1x1x25x8xf32>
    %12 = vector.shape_cast %11 : vector<1x1x25x8xf32> to vector<25x8xf32>
    %13 = vector.shape_cast %10 : vector<25x8xf32> to vector<1x1x25x8xf32>
    tpu.vector_store %arg5[%c0_7, %c0_8, %c0_9, %c0_10], %13 {strides = array<i32>} : memref<1x1x25x8xf32, #tpu.memory_space<vmem>>, vector<1x1x25x8xf32>,
    return
  }
  func.func @transform_0(%arg0: i32, %arg1: i32) -> (i32, i32, i32) {
    %c0_i32 = arith.constant 0 : i32
    %c0_i32_0 = arith.constant 0 : i32
    return %arg0, %c0_i32, %arg1 : i32, i32, i32
  }
  func.func @transform_1(%arg0: i32, %arg1: i32) -> (i32, i32) {
    %c0_i32 = arith.constant 0 : i32
    %c0_i32_0 = arith.constant 0 : i32
    %c0_i32_1 = arith.constant 0 : i32
    return %c0_i32, %c0_i32_0 : i32, i32
  }
  func.func @transform_2(%arg0: i32, %arg1: i32) -> (i32, i32) {
    %c0_i32 = arith.constant 0 : i32
    %c0_i32_0 = arith.constant 0 : i32
    %c0_i32_1 = arith.constant 0 : i32
    return %c0_i32, %c0_i32_0 : i32, i32
  }
  func.func @transform_3(%arg0: i32, %arg1: i32) -> (i32, i32, i32, i32) {
    %c0_i32 = arith.constant 0 : i32
    %c0_i32_0 = arith.constant 0 : i32
    %c0_i32_1 = arith.constant 0 : i32
    return %arg0, %arg1, %c0_i32, %c0_i32_0 : i32, i32, i32, i32
  }
}

module attributes {stable_mosaic.version = 11 : i64} {
  func.func @bn_residual_kernel(%arg0: i32, %arg1: i32, %arg2: memref<1x16x1024xf32, #tpu.memory_space<vmem>>, %arg3: memref<8x16xbf16, #tpu.memory_space<vmem>>, %arg4: memref<8x1xf32, #tpu.memory_space<vmem>>, %arg5: memref<1x16x8xbf16, #tpu.memory_space<vmem>>, %arg6: memref<16x1xf32, #tpu.memory_space<vmem>>, %arg7: memref<1x16x1024xf32, #tpu.memory_space<vmem>>) attributes {dimension_semantics = [#tpu.dimension_semantics<parallel>, #tpu.dimension_semantics<parallel>], iteration_bounds = array<i64: 2, 1>, scalar_prefetch = 0 : i64, scratch_operands = 0 : i64, tpu.core_type = #tpu.core_type<tc>, window_params = [{transform_indices = @transform_0, window_bounds = array<i64: 1, 16, 1024>}, {pipeline_mode = #tpu.pipeline_mode<synchronous>, transform_indices = @transform_1, window_bounds = array<i64: 8, 16>}, {pipeline_mode = #tpu.pipeline_mode<synchronous>, transform_indices = @transform_2, window_bounds = array<i64: 8, 1>}, {transform_indices = @transform_3, window_bounds = array<i64: 1, 16, 8>}, {pipeline_mode = #tpu.pipeline_mode<synchronous>, transform_indices = @transform_4, window_bounds = array<i64: 16, 1>}, {transform_indices = @transform_5, window_bounds = array<i64: 1, 16, 1024>}]} {
    %c0 = arith.constant 0 : index
    %c0_0 = arith.constant 0 : index
    %c0_1 = arith.constant 0 : index
    %0 = vector.load %arg2[%c0, %c0_0, %c0_1] : memref<1x16x1024xf32, #tpu.memory_space<vmem>>, vector<1x16x1024xf32>
    %1 = vector.shape_cast %0 : vector<1x16x1024xf32> to vector<16x1024xf32>
    %c0_2 = arith.constant 0 : index
    %c0_3 = arith.constant 0 : index
    %2 = vector.load %arg3[%c0_2, %c0_3] : memref<8x16xbf16, #tpu.memory_space<vmem>>, vector<8x16xbf16>
    %3 = arith.truncf %1 : vector<16x1024xf32> to vector<16x1024xbf16>
    %cst = arith.constant dense<0.000000e+00> : vector<8x1024xf32>
    %4 = tpu.matmul %2, %3, %cst {dimension_numbers = #tpu.dot_dimension_numbers<[1], [0], [0], [1], [0, 0, 1, 1], [], []>} : vector<8x16xbf16>, vector<16x1024xbf16>, vector<8x1024xf32> -> vector<8x1024xf32>
    %c0_4 = arith.constant 0 : index
    %c0_5 = arith.constant 0 : index
    %5 = vector.load %arg4[%c0_4, %c0_5] : memref<8x1xf32, #tpu.memory_space<vmem>>, vector<8x1xf32>
    %6 = vector.broadcast %5 : vector<8x1xf32> to vector<8x1024xf32>
    %7 = arith.addf %4, %6 : vector<8x1024xf32>
    %c0_6 = arith.constant 0 : index
    %c0_7 = arith.constant 0 : index
    %c0_8 = arith.constant 0 : index
    %8 = vector.load %arg5[%c0_6, %c0_7, %c0_8] : memref<1x16x8xbf16, #tpu.memory_space<vmem>>, vector<1x16x8xbf16>
    %9 = vector.shape_cast %8 : vector<1x16x8xbf16> to vector<16x8xbf16>
    %10 = arith.truncf %7 : vector<8x1024xf32> to vector<8x1024xbf16>
    %cst_9 = arith.constant dense<0.000000e+00> : vector<16x1024xf32>
    %11 = tpu.matmul %9, %10, %cst_9 {dimension_numbers = #tpu.dot_dimension_numbers<[1], [0], [0], [1], [0, 0, 1, 1], [], []>} : vector<16x8xbf16>, vector<8x1024xbf16>, vector<16x1024xf32> -> vector<16x1024xf32>
    %12 = arith.addf %1, %11 : vector<16x1024xf32>
    %c0_10 = arith.constant 0 : index
    %c0_11 = arith.constant 0 : index
    %13 = vector.load %arg6[%c0_10, %c0_11] : memref<16x1xf32, #tpu.memory_space<vmem>>, vector<16x1xf32>
    %14 = vector.broadcast %13 : vector<16x1xf32> to vector<16x1024xf32>
    %15 = arith.addf %12, %14 : vector<16x1024xf32>
    %c0_12 = arith.constant 0 : index
    %c0_13 = arith.constant 0 : index
    %c0_14 = arith.constant 0 : index
    %16 = vector.load %arg7[%c0_12, %c0_13, %c0_14] : memref<1x16x1024xf32, #tpu.memory_space<vmem>>, vector<1x16x1024xf32>
    %17 = vector.shape_cast %16 : vector<1x16x1024xf32> to vector<16x1024xf32>
    %18 = vector.shape_cast %15 : vector<16x1024xf32> to vector<1x16x1024xf32>
    tpu.vector_store %arg7[%c0_12, %c0_13, %c0_14], %18 {strides = array<i32>} : memref<1x16x1024xf32, #tpu.memory_space<vmem>>, vector<1x16x1024xf32>,
    return
  }
  func.func @transform_0(%arg0: i32, %arg1: i32) -> (i32, i32, i32) {
    %c0_i32 = arith.constant 0 : i32
    %c0_i32_0 = arith.constant 0 : i32
    return %arg0, %c0_i32, %arg1 : i32, i32, i32
  }
  func.func @transform_1(%arg0: i32, %arg1: i32) -> (i32, i32) {
    %c0_i32 = arith.constant 0 : i32
    %c0_i32_0 = arith.constant 0 : i32
    %c0_i32_1 = arith.constant 0 : i32
    return %c0_i32, %c0_i32_0 : i32, i32
  }
  func.func @transform_2(%arg0: i32, %arg1: i32) -> (i32, i32) {
    %c0_i32 = arith.constant 0 : i32
    %c0_i32_0 = arith.constant 0 : i32
    %c0_i32_1 = arith.constant 0 : i32
    return %c0_i32, %c0_i32_0 : i32, i32
  }
  func.func @transform_3(%arg0: i32, %arg1: i32) -> (i32, i32, i32) {
    %c0_i32 = arith.constant 0 : i32
    %c0_i32_0 = arith.constant 0 : i32
    %c0_i32_1 = arith.constant 0 : i32
    return %arg0, %c0_i32, %c0_i32_0 : i32, i32, i32
  }
  func.func @transform_4(%arg0: i32, %arg1: i32) -> (i32, i32) {
    %c0_i32 = arith.constant 0 : i32
    %c0_i32_0 = arith.constant 0 : i32
    %c0_i32_1 = arith.constant 0 : i32
    return %c0_i32, %c0_i32_0 : i32, i32
  }
  func.func @transform_5(%arg0: i32, %arg1: i32) -> (i32, i32, i32) {
    %c0_i32 = arith.constant 0 : i32
    %c0_i32_0 = arith.constant 0 : i32
    return %arg0, %c0_i32, %arg1 : i32, i32, i32
  }
}

</mosaic_0001>

<llo_original>
// kernel: glore_unit_pallas.2
$region0: #{glore_unit_pallas.2}
  #allocation0 [shape = 'u32[]', space=smem, size = 0x4, offset = 0x4, fixed_abs, tag = 'smem constant byte address 0x4 - core index']
  #allocation1 [shape = 'u32[144,128]{1,0:T(1,128)}', space=vmem, size = 0x12000, scoped, tag = 'internal scratch']
  %s0 = inlined_call_operand.vmem [shape: f32[2,16,1024], index: 0, kind: input, shape index: {}]
  %s1 = inlined_call_operand.vmem [shape: bf16[25,16], index: 1, kind: input, shape index: {}]
  %s2 = inlined_call_operand.vmem [shape: f32[25,1], index: 2, kind: input, shape index: {}]
  %s3 = inlined_call_operand.vmem [shape: f32[2,1,25,8], index: 3, kind: output, shape index: {}]
  %s4 = sld [smem:[#allocation0]]
  $region45: #{glore_unit_pallas.2} parent=0
    _
  %s6 = ssub.s32 1, %s4
  %s7 = scalar_select 0, %s6, %s4
  loop: start=0, step=1, limit=4
  $region2: #{glore_unit_pallas.2} parent=0 // loop_pre_header
    _
  $region3: #{glore_unit_pallas.2} parent=0 // loop_header
    %s9 = sphi 0, %s13
    %p10 = scmp.ge.s32.totalorder %s9, 4
    %s16 = sphi 0, %s28
    %s17 = sphi 0, %s24
    %s18 = sphi 0, %s16
    %s19 = sphi 0, %s17
    %s20 = sphi 0, %s18
    %s21 = sphi 0, %s19
    %s33 = sphi 0, %s35
    %s36 = sphi 0, %s33
    %s37 = sphi 0, %s36
    %s53 = sphi 0, %s37
    %s57 = sphi 0, %s57
    %s59 = sphi 0, %s57
    %s60 = sphi 0, %s59
    %s74 = sphi 0, %s60
    %s78 = sphi 0, %s78
    %s80 = sphi 0, %s78
    %s81 = sphi 0, %s80
    %s95 = sphi 0, %s81
    %s103 = sphi 0, %s105
    %s106 = sphi 0, %s103
    %s107 = sphi 0, %s106
    %s123 = sphi 0, %s107
  $region4: #{glore_unit_pallas.2} parent=0 // loop_header_branch
    %12 = sbr.rel (%p10) target = $region8
  $region5: #{glore_unit_pallas.2} parent=0 // loop_body
    %s14 = ssub.s32 %s9, 1
    %s15 = ssub.s32 %s9, 2
    %s22 = sadd.s32 1, %s17
    %p23 = scmp.ge.s32.totalorder %s22, 1
    %s24 = scalar_select %p23, 0, %s22
    %s25 = sadd.s32 1, %s16
    %s26 = scalar_select %p23, %s25, %s16
    %p27 = scmp.ge.s32.totalorder %s26, 2
    %s28 = scalar_select %p27, 0, %s26
    %s29 = ssub.s32 %s16, %s28
    %s30 = ssub.s32 %s17, %s24
    %s31 = sor.u32 %s29, %s30
    %p32 = scmp.eq.s32.totalorder %s31, 0
    %s34 = sadd.s32 %s33, 1
    %s35 = scalar_select %p32, %s33, %s34
    %p38 = pneg %p32
    %p39 = scmp.eq.s32.totalorder %s9, 1
    %p40 = por %p38, %p39
    %p41 = scmp.ne.s32.totalorder %s33, %s36
    %p42 = scmp.eq.s32.totalorder %s9, 0
    %p43 = por %p41, %p42
    %p44 = scmp.ne.s32.totalorder %s33, %s36
    %p45 = scmp.eq.s32.totalorder %s14, 1
    %p46 = por %p44, %p45
    %p47 = scmp.ne.s32.totalorder %s36, %s37
    %p48 = scmp.eq.s32.totalorder %s14, 0
    %p49 = por %p47, %p48
    %p50 = scmp.ne.s32.totalorder %s36, %s37
    %p51 = scmp.eq.s32.totalorder %s15, 1
    %p52 = por %p50, %p51
    %p54 = scmp.ne.s32.totalorder %s37, %s53
    %p55 = scmp.eq.s32.totalorder %s15, 0
    %p56 = por %p54, %p55
    %s58 = sadd.s32 %s57, 1
    %p61 = scmp.eq.s32.totalorder %s9, 1
    %p62 = scmp.ne.s32.totalorder %s57, %s59
    %p63 = scmp.eq.s32.totalorder %s9, 0
    %p64 = por %p62, %p63
    %p65 = scmp.ne.s32.totalorder %s57, %s59
    %p66 = scmp.eq.s32.totalorder %s14, 1
    %p67 = por %p65, %p66
    %p68 = scmp.ne.s32.totalorder %s59, %s60
    %p69 = scmp.eq.s32.totalorder %s14, 0
    %p70 = por %p68, %p69
    %p71 = scmp.ne.s32.totalorder %s59, %s60
    %p72 = scmp.eq.s32.totalorder %s15, 1
    %p73 = por %p71, %p72
    %p75 = scmp.ne.s32.totalorder %s60, %s74
    %p76 = scmp.eq.s32.totalorder %s15, 0
    %p77 = por %p75, %p76
    %s79 = sadd.s32 %s78, 1
    %p82 = scmp.eq.s32.totalorder %s9, 1
    %p83 = scmp.ne.s32.totalorder %s78, %s80
    %p84 = scmp.eq.s32.totalorder %s9, 0
    %p85 = por %p83, %p84
    %p86 = scmp.ne.s32.totalorder %s78, %s80
    %p87 = scmp.eq.s32.totalorder %s14, 1
    %p88 = por %p86, %p87
    %p89 = scmp.ne.s32.totalorder %s80, %s81
    %p90 = scmp.eq.s32.totalorder %s14, 0
    %p91 = por %p89, %p90
    %p92 = scmp.ne.s32.totalorder %s80, %s81
    %p93 = scmp.eq.s32.totalorder %s15, 1
    %p94 = por %p92, %p93
    %p96 = scmp.ne.s32.totalorder %s81, %s95
    %p97 = scmp.eq.s32.totalorder %s15, 0
    %p98 = por %p96, %p97
    %s99 = ssub.s32 %s16, %s28
    %s100 = ssub.s32 %s17, %s24
    %s101 = sor.u32 %s99, %s100
    %p102 = scmp.eq.s32.totalorder %s101, 0
    %s104 = sadd.s32 %s103, 1
    %s105 = scalar_select %p102, %s103, %s104
    %p108 = pneg %p102
    %p109 = scmp.eq.s32.totalorder %s9, 1
    %p110 = por %p108, %p109
    %p111 = scmp.ne.s32.totalorder %s103, %s106
    %p112 = scmp.eq.s32.totalorder %s9, 0
    %p113 = por %p111, %p112
    %p114 = scmp.ne.s32.totalorder %s103, %s106
    %p115 = scmp.eq.s32.totalorder %s14, 1
    %p116 = por %p114, %p115
    %p117 = scmp.ne.s32.totalorder %s106, %s107
    %p118 = scmp.eq.s32.totalorder %s14, 0
    %p119 = por %p117, %p118
    %p120 = scmp.ne.s32.totalorder %s106, %s107
    %p121 = scmp.eq.s32.totalorder %s15, 1
    %p122 = por %p120, %p121
    %p124 = scmp.ne.s32.totalorder %s107, %s123
    %p125 = scmp.eq.s32.totalorder %s15, 0
    %p126 = por %p124, %p125
    %p127 = scmp.le.s32.totalorder 1, %s9
    %p128 = scmp.lt.s32.totalorder %s9, 3
    %p129 = pnand %p127, %p128
    %p130 = pneg %p129
    // Predicated region
    $region9: #{glore_unit_pallas.2} parent=5 // pred_check
      _
    $region10: #{glore_unit_pallas.2} parent=5 // pred_check_branch
      %132 = sbr.rel (%p129) target = $region12
    $region11: #{glore_unit_pallas.2} parent=5 // pred_region
      %s133 = ssub.s32 %s9, 1
      // Predicated region
      $region13: #{glore_unit_pallas.2} parent=11 // pred_check
        %p134 = pneg %p70
      $region14: #{glore_unit_pallas.2} parent=11 // pred_check_branch
        %136 = sbr.rel (%p134) target = $region16
      $region15: #{glore_unit_pallas.2} parent=11 // pred_region
        _
      $region16: #{glore_unit_pallas.2} parent=11 // pred_fallthru
        _
      // Predicated region
      $region17: #{glore_unit_pallas.2} parent=11 // pred_check
        %p137 = pneg %p91
      $region18: #{glore_unit_pallas.2} parent=11 // pred_check_branch
        %139 = sbr.rel (%p137) target = $region20
      $region19: #{glore_unit_pallas.2} parent=11 // pred_region
        _
      $region20: #{glore_unit_pallas.2} parent=11 // pred_fallthru
        _
    $region12: #{glore_unit_pallas.2} parent=5 // pred_fallthru
      _
    %p140 = scmp.lt.s32.totalorder %s9, 2
    // Predicated region
    $region21: #{glore_unit_pallas.2} parent=5 // pred_check
      %p141 = pneg %p140
    $region22: #{glore_unit_pallas.2} parent=5 // pred_check_branch
      %143 = sbr.rel (%p141) target = $region24
    $region23: #{glore_unit_pallas.2} parent=5 // pred_region
      // Predicated region
      $region25: #{glore_unit_pallas.2} parent=23 // pred_check
        %p144 = pneg %p43
      $region26: #{glore_unit_pallas.2} parent=23 // pred_check_branch
        %146 = sbr.rel (%p144) target = $region28
      $region27: #{glore_unit_pallas.2} parent=23 // pred_region
        %s147 = smul.u32 8, %s17
        %p148 = scmp.lt.s32.totalorder %s16, 1
        %s149 = scalar_select %p148, %s16, 1
        %p150 = scmp.lt.s32.totalorder %s147, 7
        %s151 = scalar_select %p150, %s147, 7
        %s152 = smul.addr %s149, 16
        %s153 = sadd.s32 %s151, %s152
        %s154 = smul.addr %s153, 8
        %s155 = scalar_lea.vmem %s0, %s154
        %s156 = smul.u32 8, %s17
      $region28: #{glore_unit_pallas.2} parent=23 // pred_fallthru
        _
    $region24: #{glore_unit_pallas.2} parent=5 // pred_fallthru
      _
    %p157 = scmp.le.s32.totalorder 1, %s9
    %p158 = scmp.lt.s32.totalorder %s9, 3
    %p159 = pnand %p157, %p158
    %p160 = pneg %p159
    // Predicated region
    $region29: #{glore_unit_pallas.2} parent=5 // pred_check
      _
    $region30: #{glore_unit_pallas.2} parent=5 // pred_check_branch
      %162 = sbr.rel (%p159) target = $region32
    $region31: #{glore_unit_pallas.2} parent=5 // pred_region
      %s163 = ssub.s32 %s9, 1
      %s164 = smul.u32 8, %s19
      %p165 = scmp.lt.s32.totalorder %s18, 1
      %s166 = scalar_select %p165, %s18, 1
      %p167 = scmp.lt.s32.totalorder %s164, 7
      %s168 = scalar_select %p167, %s164, 7
      %s169 = smul.addr %s166, 16
      %s170 = sadd.s32 %s168, %s169
      %s171 = smul.addr %s170, 8
      %s172 = scalar_lea.vmem %s0, %s171
      %p173 = pneg %p49
      %p174 = pneg %p46
      %p175 = pneg %p70
      %p176 = pneg %p67
      %p177 = pneg %p91
      %p178 = pneg %p88
      %p179 = pneg %p119
      %p180 = pneg %p116
      %p181 = scmp.lt.s32.totalorder %s18, 1
      %s182 = scalar_select %p181, %s18, 1
      %p183 = scmp.lt.s32.totalorder %s19, 0
      %s184 = scalar_select %p183, %s19, 0
      %s185 = smul.addr %s184, 4
      %s186 = smul.addr %s182, 4
      %s187 = sadd.s32 %s185, %s186
      %s188 = smul.addr %s187, 8
      %s189 = scalar_lea.vmem %s3, %s188
      %s190 = smul.u32 8, %s19
      %p191 = scmp.lt.s32.totalorder %s18, 1
      %s192 = scalar_select %p191, %s18, 1
      %p193 = scmp.lt.s32.totalorder %s190, 7
      %s194 = scalar_select %p193, %s190, 7
      %s195 = smul.addr %s192, 16
      %s196 = sadd.s32 %s194, %s195
      %s197 = smul.addr %s196, 8
      %s198 = scalar_lea.vmem %s0, %s197
      %s199 = smul.u32 8, %s19
      %p200 = scmp.lt.s32.totalorder %s18, 1
      %s201 = scalar_select %p200, %s18, 1
      %p202 = scmp.lt.s32.totalorder %s19, 0
      %s203 = scalar_select %p202, %s19, 0
      %s204 = smul.addr %s203, 4
      %s205 = smul.addr %s201, 4
      %s206 = sadd.s32 %s204, %s205
      %s207 = smul.addr %s206, 8
      %s208 = scalar_lea.vmem %s3, %s207
      %v210 = vld [vmem:[%s198] sm:$0xff]
      %v211 = vld [vmem:[%s198 + $0x8] sm:$0xff]
      %v212 = vld [vmem:[%s198 + $0x10] sm:$0xff]
      %v213 = vld [vmem:[%s198 + $0x18] sm:$0xff]
      %v214 = vld [vmem:[%s198 + $0x20] sm:$0xff]
      %v215 = vld [vmem:[%s198 + $0x28] sm:$0xff]
      %v216 = vld [vmem:[%s198 + $0x30] sm:$0xff]
      %v217 = vld [vmem:[%s198 + $0x38] sm:$0xff]
      %v218 = vld [vmem:[%s198 + $0x40] sm:$0xff]
      %v219 = vld [vmem:[%s198 + $0x48] sm:$0xff]
      %v220 = vld [vmem:[%s198 + $0x50] sm:$0xff]
      %v221 = vld [vmem:[%s198 + $0x58] sm:$0xff]
      %v222 = vld [vmem:[%s198 + $0x60] sm:$0xff]
      %v223 = vld [vmem:[%s198 + $0x68] sm:$0xff]
      %v224 = vld [vmem:[%s198 + $0x70] sm:$0xff]
      %v225 = vld [vmem:[%s198 + $0x78] sm:$0xff]
      %v226 = vpack.c.bf16 %v218, %v210
      %v227 = vpack.c.bf16 %v219, %v211
      %v228 = vpack.c.bf16 %v220, %v212
      %v229 = vpack.c.bf16 %v221, %v213
      %v230 = vpack.c.bf16 %v222, %v214
      %v231 = vpack.c.bf16 %v223, %v215
      %v232 = vpack.c.bf16 %v224, %v216
      %v233 = vpack.c.bf16 %v225, %v217
      %v234 = vld [vmem:[%s1] sm:$0xf]
      %v235 = vld [vmem:[%s1 + $0x4] sm:$0xf]
      %v236 = vld [vmem:[%s1 + $0x8] sm:$0xf]
      %v237 = vld [vmem:[%s1 + $0xc] sm:$0x1]
      %v238 = vld [vmem:[%s2] sm:$0xff]
      %v239 = vld [vmem:[%s2 + $0x8] sm:$0xff]
      %v240 = vld [vmem:[%s2 + $0x10] sm:$0xff]
      %v241 = vld [vmem:[%s2 + $0x18] sm:$0x1]
      %243 = vset.pattern.permute.xlu0 0
      %244 = vperm.xlu0 %243, %v238
      %v245 = vpop.permute.xlu0 %244
      %248 = vset.pattern.permute.xlu0 0
      %249 = vperm.xlu0 %248, %v239
      %v250 = vpop.permute.xlu0 %249
      %253 = vset.pattern.permute.xlu0 0
      %254 = vperm.xlu0 %253, %v240
      %v255 = vpop.permute.xlu0 %254
      %258 = vset.pattern.permute.xlu0 0
      %259 = vperm.xlu0 %258, %v241
      %v260 = vpop.permute.xlu0 %259
      %v266 = vunpack.c.l.b16 %v234
      %v267 = vunpack.c.l.b16 %v235
      %v268 = vunpack.c.l.b16 %v236
      %v269 = vunpack.c.l.b16 %v237
      %v270 = vpack.c.b16 %v267, %v266
      %v271 = vpack.c.b16 %v269, %v268
      %vm272 = vcmask 130048
      %v274 = vsel %vm272, %v270, 0
      %v277 = vsel %vm272, %v271, 0
      %279 = vmatprep.subr.bf16.mxu0 0
      %280 = vmatpush1.bf16.msra.mxu0 0
      %281 = vmatprep.subr.bf16.mxu0 0
      %282 = vmatpush1.bf16.msra.mxu0 0
      %283 = vmatprep.subr.bf16.mxu0 0
      %284 = vmatpush1.bf16.msra.mxu0 0
      %285 = vmatprep.subr.bf16.mxu0 0
      %286 = vmatpush1.bf16.msra.mxu0 0
      %287 = vmatprep.subr.bf16.mxu0 0
      %288 = vmatpush1.bf16.msra.mxu0 0
      %289 = vmatprep.subr.bf16.mxu0 0
      %290 = vmatpush1.bf16.msra.mxu0 0
      %291 = vmatprep.subr.bf16.mxu0 0
      %292 = vmatpush1.bf16.msra.mxu0 0
      %293 = vmatprep.subr.bf16.mxu0 %v227
      %294 = vmatpush1.bf16.msra.mxu0 %v226
      %295 = vmatprep.subr.bf16.mxu0 0
      %296 = vmatpush2.bf16.msra.mxu0 0
      %297 = vmatprep.subr.bf16.mxu0 0
      %298 = vmatpush2.bf16.msra.mxu0 0
      %299 = vmatprep.subr.bf16.mxu0 0
      %300 = vmatpush2.bf16.msra.mxu0 0
      %301 = vmatprep.subr.bf16.mxu0 0
      %302 = vmatpush2.bf16.msra.mxu0 0
      %303 = vmatprep.subr.bf16.mxu0 0
      %304 = vmatpush2.bf16.msra.mxu0 0
      %305 = vmatprep.subr.bf16.mxu0 0
      %306 = vmatpush2.bf16.msra.mxu0 0
      %307 = vmatprep.subr.bf16.mxu0 0
      %308 = vmatpush2.bf16.msra.mxu0 0
      %309 = vmatprep.subr.bf16.mxu0 0
      %310 = vmatpush2.bf16.msra.mxu0 0
      %311 = vmatprep.mubr.bf16.mxu0 0
      %312 = vmatmul.mubr.bf16.gmra.mxu0 %v274
      %v313 = vpop.f32.mrf.mxu0
      %v314 = vadd.f32 %v245, %v313
      %v315 = vpop.f32.mrf.mxu0
      %v316 = vadd.f32 %v245, %v315
      %v317 = vpop.f32.mrf.mxu0
      %v318 = vadd.f32 %v250, %v317
      %v319 = vpop.f32.mrf.mxu0
      %v320 = vadd.f32 %v250, %v319
      %321 = vmatprep.mubr.bf16.mxu0 0
      %322 = vmatmul.mubr.bf16.gmra.mxu0 %v277
      %v323 = vpop.f32.mrf.mxu0
      %v324 = vadd.f32 %v255, %v323
      %v325 = vpop.f32.mrf.mxu0
      %v326 = vadd.f32 %v255, %v325
      %v327 = vpop.f32.mrf.mxu0
      %v328 = vadd.f32 %v260, %v327
      %v329 = vpop.f32.mrf.mxu0
      %v330 = vadd.f32 %v260, %v329
      %331 = vdwg.mxu0
      %332 = vmatprep.subr.bf16.mxu0 0
      %333 = vmatpush1.bf16.msra.mxu0 0
      %334 = vmatprep.subr.bf16.mxu0 0
      %335 = vmatpush1.bf16.msra.mxu0 0
      %336 = vmatprep.subr.bf16.mxu0 0
      %337 = vmatpush1.bf16.msra.mxu0 0
      %338 = vmatprep.subr.bf16.mxu0 0
      %339 = vmatpush1.bf16.msra.mxu0 0
      %340 = vmatprep.subr.bf16.mxu0 0
      %341 = vmatpush1.bf16.msra.mxu0 0
      %342 = vmatprep.subr.bf16.mxu0 0
      %343 = vmatpush1.bf16.msra.mxu0 0
      %344 = vmatprep.subr.bf16.mxu0 0
      %345 = vmatpush1.bf16.msra.mxu0 0
      %346 = vmatprep.subr.bf16.mxu0 %v229
      %347 = vmatpush1.bf16.msra.mxu0 %v228
      %348 = vmatprep.subr.bf16.mxu0 0
      %349 = vmatpush2.bf16.msra.mxu0 0
      %350 = vmatprep.subr.bf16.mxu0 0
      %351 = vmatpush2.bf16.msra.mxu0 0
      %352 = vmatprep.subr.bf16.mxu0 0
      %353 = vmatpush2.bf16.msra.mxu0 0
      %354 = vmatprep.subr.bf16.mxu0 0
      %355 = vmatpush2.bf16.msra.mxu0 0
      %356 = vmatprep.subr.bf16.mxu0 0
      %357 = vmatpush2.bf16.msra.mxu0 0
      %358 = vmatprep.subr.bf16.mxu0 0
      %359 = vmatpush2.bf16.msra.mxu0 0
      %360 = vmatprep.subr.bf16.mxu0 0
      %361 = vmatpush2.bf16.msra.mxu0 0
      %362 = vmatprep.subr.bf16.mxu0 0
      %363 = vmatpush2.bf16.msra.mxu0 0
      %364 = vmatprep.mubr.bf16.mxu0 0
      %365 = vmatmul.mubr.bf16.gmra.mxu0 %v274
      %v366 = vpop.f32.mrf.mxu0
      %v367 = vadd.f32 %v245, %v366
      %v368 = vpop.f32.mrf.mxu0
      %v369 = vadd.f32 %v245, %v368
      %v370 = vpop.f32.mrf.mxu0
      %v371 = vadd.f32 %v250, %v370
      %v372 = vpop.f32.mrf.mxu0
      %v373 = vadd.f32 %v250, %v372
      %374 = vmatprep.mubr.bf16.mxu0 0
      %375 = vmatmul.mubr.bf16.gmra.mxu0 %v277
      %v376 = vpop.f32.mrf.mxu0
      %v377 = vadd.f32 %v255, %v376
      %v378 = vpop.f32.mrf.mxu0
      %v379 = vadd.f32 %v255, %v378
      %v380 = vpop.f32.mrf.mxu0
      %v381 = vadd.f32 %v260, %v380
      %v382 = vpop.f32.mrf.mxu0
      %v383 = vadd.f32 %v260, %v382
      %384 = vdwg.mxu0
      %385 = vmatprep.subr.bf16.mxu0 0
      %386 = vmatpush1.bf16.msra.mxu0 0
      %387 = vmatprep.subr.bf16.mxu0 0
      %388 = vmatpush1.bf16.msra.mxu0 0
      %389 = vmatprep.subr.bf16.mxu0 0
      %390 = vmatpush1.bf16.msra.mxu0 0
      %391 = vmatprep.subr.bf16.mxu0 0
      %392 = vmatpush1.bf16.msra.mxu0 0
      %393 = vmatprep.subr.bf16.mxu0 0
      %394 = vmatpush1.bf16.msra.mxu0 0
      %395 = vmatprep.subr.bf16.mxu0 0
      %396 = vmatpush1.bf16.msra.mxu0 0
      %397 = vmatprep.subr.bf16.mxu0 0
      %398 = vmatpush1.bf16.msra.mxu0 0
      %399 = vmatprep.subr.bf16.mxu0 %v231
      %400 = vmatpush1.bf16.msra.mxu0 %v230
      %401 = vmatprep.subr.bf16.mxu0 0
      %402 = vmatpush2.bf16.msra.mxu0 0
      %403 = vmatprep.subr.bf16.mxu0 0
      %404 = vmatpush2.bf16.msra.mxu0 0
      %405 = vmatprep.subr.bf16.mxu0 0
      %406 = vmatpush2.bf16.msra.mxu0 0
      %407 = vmatprep.subr.bf16.mxu0 0
      %408 = vmatpush2.bf16.msra.mxu0 0
      %409 = vmatprep.subr.bf16.mxu0 0
      %410 = vmatpush2.bf16.msra.mxu0 0
      %411 = vmatprep.subr.bf16.mxu0 0
      %412 = vmatpush2.bf16.msra.mxu0 0
      %413 = vmatprep.subr.bf16.mxu0 0
      %414 = vmatpush2.bf16.msra.mxu0 0
      %415 = vmatprep.subr.bf16.mxu0 0
      %416 = vmatpush2.bf16.msra.mxu0 0
      %417 = vmatprep.mubr.bf16.mxu0 0
      %418 = vmatmul.mubr.bf16.gmra.mxu0 %v274
      %v419 = vpop.f32.mrf.mxu0
      %v420 = vadd.f32 %v245, %v419
      %v421 = vpop.f32.mrf.mxu0
      %v422 = vadd.f32 %v245, %v421
      %v423 = vpop.f32.mrf.mxu0
      %v424 = vadd.f32 %v250, %v423
      %v425 = vpop.f32.mrf.mxu0
      %v426 = vadd.f32 %v250, %v425
      %427 = vmatprep.mubr.bf16.mxu0 0
      %428 = vmatmul.mubr.bf16.gmra.mxu0 %v277
      %v429 = vpop.f32.mrf.mxu0
      %v430 = vadd.f32 %v255, %v429
      %v431 = vpop.f32.mrf.mxu0
      %v432 = vadd.f32 %v255, %v431
      %v433 = vpop.f32.mrf.mxu0
      %v434 = vadd.f32 %v260, %v433
      %v435 = vpop.f32.mrf.mxu0
      %v436 = vadd.f32 %v260, %v435
      %437 = vdwg.mxu0
      %438 = vmatprep.subr.bf16.mxu0 0
      %439 = vmatpush1.bf16.msra.mxu0 0
      %440 = vmatprep.subr.bf16.mxu0 0
      %441 = vmatpush1.bf16.msra.mxu0 0
      %442 = vmatprep.subr.bf16.mxu0 0
      %443 = vmatpush1.bf16.msra.mxu0 0
      %444 = vmatprep.subr.bf16.mxu0 0
      %445 = vmatpush1.bf16.msra.mxu0 0
      %446 = vmatprep.subr.bf16.mxu0 0
      %447 = vmatpush1.bf16.msra.mxu0 0
      %448 = vmatprep.subr.bf16.mxu0 0
      %449 = vmatpush1.bf16.msra.mxu0 0
      %450 = vmatprep.subr.bf16.mxu0 0
      %451 = vmatpush1.bf16.msra.mxu0 0
      %452 = vmatprep.subr.bf16.mxu0 %v233
      %453 = vmatpush1.bf16.msra.mxu0 %v232
      %454 = vmatprep.subr.bf16.mxu0 0
      %455 = vmatpush2.bf16.msra.mxu0 0
      %456 = vmatprep.subr.bf16.mxu0 0
      %457 = vmatpush2.bf16.msra.mxu0 0
      %458 = vmatprep.subr.bf16.mxu0 0
      %459 = vmatpush2.bf16.msra.mxu0 0
      %460 = vmatprep.subr.bf16.mxu0 0
      %461 = vmatpush2.bf16.msra.mxu0 0
      %462 = vmatprep.subr.bf16.mxu0 0
      %463 = vmatpush2.bf16.msra.mxu0 0
      %464 = vmatprep.subr.bf16.mxu0 0
      %465 = vmatpush2.bf16.msra.mxu0 0
      %466 = vmatprep.subr.bf16.mxu0 0
      %467 = vmatpush2.bf16.msra.mxu0 0
      %468 = vmatprep.subr.bf16.mxu0 0
      %469 = vmatpush2.bf16.msra.mxu0 0
      %470 = vmatprep.mubr.bf16.mxu0 0
      %471 = vmatmul.mubr.bf16.gmra.mxu0 %v274
      %v472 = vpop.f32.mrf.mxu0
      %v473 = vadd.f32 %v245, %v472
      %v474 = vpop.f32.mrf.mxu0
      %v475 = vadd.f32 %v245, %v474
      %v476 = vpop.f32.mrf.mxu0
      %v477 = vadd.f32 %v250, %v476
      %v478 = vpop.f32.mrf.mxu0
      %v479 = vadd.f32 %v250, %v478
      %480 = vmatprep.mubr.bf16.mxu0 0
      %481 = vmatmul.mubr.bf16.gmra.mxu0 %v277
      %v482 = vpop.f32.mrf.mxu0
      %v483 = vadd.f32 %v255, %v482
      %v484 = vpop.f32.mrf.mxu0
      %v485 = vadd.f32 %v255, %v484
      %v486 = vpop.f32.mrf.mxu0
      %v487 = vadd.f32 %v260, %v486
      %v488 = vpop.f32.mrf.mxu0
      %v489 = vadd.f32 %v260, %v488
      %490 = vdwg.mxu0
      %v491 = vpack.c.bf16 %v318, %v314
      %v492 = vpack.c.bf16 %v320, %v316
      %v493 = vpack.c.bf16 %v371, %v367
      %v494 = vpack.c.bf16 %v373, %v369
      %v495 = vpack.c.bf16 %v424, %v420
      %v496 = vpack.c.bf16 %v426, %v422
      %v497 = vpack.c.bf16 %v477, %v473
      %v498 = vpack.c.bf16 %v479, %v475
      %v499 = vpack.c.bf16 %v328, %v324
      %v500 = vpack.c.bf16 %v330, %v326
      %v501 = vpack.c.bf16 %v381, %v377
      %v502 = vpack.c.bf16 %v383, %v379
      %v503 = vpack.c.bf16 %v434, %v430
      %v504 = vpack.c.bf16 %v436, %v432
      %v505 = vpack.c.bf16 %v487, %v483
      %v506 = vpack.c.bf16 %v489, %v485
      %507 = vmatprep.subr.bf16.mxu0 0
      %508 = vmatpush1.bf16.xpose.msra.mxu0 0
      %509 = vmatprep.subr.bf16.mxu0 0
      %510 = vmatpush1.bf16.xpose.msra.mxu0 0
      %511 = vmatprep.subr.bf16.mxu0 0
      %512 = vmatpush1.bf16.xpose.msra.mxu0 0
      %513 = vmatprep.subr.bf16.mxu0 0
      %514 = vmatpush1.bf16.xpose.msra.mxu0 0
      %515 = vmatprep.subr.bf16.mxu0 0
      %516 = vmatpush1.bf16.xpose.msra.mxu0 0
      %517 = vmatprep.subr.bf16.mxu0 0
      %518 = vmatpush1.bf16.xpose.msra.mxu0 0
      %519 = vmatprep.subr.bf16.mxu0 0
      %520 = vmatpush1.bf16.xpose.msra.mxu0 0
      %521 = vmatprep.subr.bf16.mxu0 %v500
      %522 = vmatpush1.bf16.xpose.msra.mxu0 %v499
      %523 = vmatprep.subr.bf16.mxu0 0
      %524 = vmatpush2.bf16.xpose.msra.mxu0 0
      %525 = vmatprep.subr.bf16.mxu0 0
      %526 = vmatpush2.bf16.xpose.msra.mxu0 0
      %527 = vmatprep.subr.bf16.mxu0 0
      %528 = vmatpush2.bf16.xpose.msra.mxu0 0
      %529 = vmatprep.subr.bf16.mxu0 0
      %530 = vmatpush2.bf16.xpose.msra.mxu0 0
      %531 = vmatprep.subr.bf16.mxu0 0
      %532 = vmatpush2.bf16.xpose.msra.mxu0 0
      %533 = vmatprep.subr.bf16.mxu0 0
      %534 = vmatpush2.bf16.xpose.msra.mxu0 0
      %535 = vmatprep.subr.bf16.mxu0 0
      %536 = vmatpush2.bf16.xpose.msra.mxu0 0
      %537 = vmatprep.subr.bf16.mxu0 0
      %538 = vmatpush2.bf16.xpose.msra.mxu0 0
      %539 = vmatprep.mubr.bf16.mxu0 %v492
      %540 = vmatmul.mubr.bf16.gmra.mxu0 %v491
      %v541 = vpop.f32.mrf.mxu0
      %v542 = vadd.f32 0.0, %v541
      %v543 = vpop.f32.mrf.mxu0
      %v544 = vpop.f32.mrf.mxu0
      %v545 = vadd.f32 0.0, %v544
      %v546 = vpop.f32.mrf.mxu0
      %547 = vmatprep.mubr.bf16.mxu0 %v500
      %548 = vmatmul.mubr.bf16.gmra.mxu0 %v499
      %v549 = vpop.f32.mrf.mxu0
      %v550 = vadd.f32 0.0, %v549
      %v551 = vpop.f32.mrf.mxu0
      %v552 = vpop.f32.mrf.mxu0
      %v553 = vadd.f32 0.0, %v552
      %v554 = vpop.f32.mrf.mxu0
      %555 = vdwg.mxu0
      %556 = vmatprep.subr.bf16.mxu0 0
      %557 = vmatpush1.bf16.xpose.msra.mxu0 0
      %558 = vmatprep.subr.bf16.mxu0 0
      %559 = vmatpush1.bf16.xpose.msra.mxu0 0
      %560 = vmatprep.subr.bf16.mxu0 0
      %561 = vmatpush1.bf16.xpose.msra.mxu0 0
      %562 = vmatprep.subr.bf16.mxu0 0
      %563 = vmatpush1.bf16.xpose.msra.mxu0 0
      %564 = vmatprep.subr.bf16.mxu0 0
      %565 = vmatpush1.bf16.xpose.msra.mxu0 0
      %566 = vmatprep.subr.bf16.mxu0 0
      %567 = vmatpush1.bf16.xpose.msra.mxu0 0
      %568 = vmatprep.subr.bf16.mxu0 0
      %569 = vmatpush1.bf16.xpose.msra.mxu0 0
      %570 = vmatprep.subr.bf16.mxu0 %v502
      %571 = vmatpush1.bf16.xpose.msra.mxu0 %v501
      %572 = vmatprep.subr.bf16.mxu0 0
      %573 = vmatpush2.bf16.xpose.msra.mxu0 0
      %574 = vmatprep.subr.bf16.mxu0 0
      %575 = vmatpush2.bf16.xpose.msra.mxu0 0
      %576 = vmatprep.subr.bf16.mxu0 0
      %577 = vmatpush2.bf16.xpose.msra.mxu0 0
      %578 = vmatprep.subr.bf16.mxu0 0
      %579 = vmatpush2.bf16.xpose.msra.mxu0 0
      %580 = vmatprep.subr.bf16.mxu0 0
      %581 = vmatpush2.bf16.xpose.msra.mxu0 0
      %582 = vmatprep.subr.bf16.mxu0 0
      %583 = vmatpush2.bf16.xpose.msra.mxu0 0
      %584 = vmatprep.subr.bf16.mxu0 0
      %585 = vmatpush2.bf16.xpose.msra.mxu0 0
      %586 = vmatprep.subr.bf16.mxu0 0
      %587 = vmatpush2.bf16.xpose.msra.mxu0 0
      %588 = vmatprep.mubr.bf16.mxu0 %v494
      %589 = vmatmul.mubr.bf16.gmra.mxu0 %v493
      %v590 = vpop.f32.mrf.mxu0
      %v591 = vadd.f32 %v542, %v590
      %v592 = vpop.f32.mrf.mxu0
      %v593 = vpop.f32.mrf.mxu0
      %v594 = vadd.f32 %v545, %v593
      %v595 = vpop.f32.mrf.mxu0
      %596 = vmatprep.mubr.bf16.mxu0 %v502
      %597 = vmatmul.mubr.bf16.gmra.mxu0 %v501
      %v598 = vpop.f32.mrf.mxu0
      %v599 = vadd.f32 %v550, %v598
      %v600 = vpop.f32.mrf.mxu0
      %v601 = vpop.f32.mrf.mxu0
      %v602 = vadd.f32 %v553, %v601
      %v603 = vpop.f32.mrf.mxu0
      %604 = vdwg.mxu0
      %605 = vmatprep.subr.bf16.mxu0 0
      %606 = vmatpush1.bf16.xpose.msra.mxu0 0
      %607 = vmatprep.subr.bf16.mxu0 0
      %608 = vmatpush1.bf16.xpose.msra.mxu0 0
      %609 = vmatprep.subr.bf16.mxu0 0
      %610 = vmatpush1.bf16.xpose.msra.mxu0 0
      %611 = vmatprep.subr.bf16.mxu0 0
      %612 = vmatpush1.bf16.xpose.msra.mxu0 0
      %613 = vmatprep.subr.bf16.mxu0 0
      %614 = vmatpush1.bf16.xpose.msra.mxu0 0
      %615 = vmatprep.subr.bf16.mxu0 0
      %616 = vmatpush1.bf16.xpose.msra.mxu0 0
      %617 = vmatprep.subr.bf16.mxu0 0
      %618 = vmatpush1.bf16.xpose.msra.mxu0 0
      %619 = vmatprep.subr.bf16.mxu0 %v504
      %620 = vmatpush1.bf16.xpose.msra.mxu0 %v503
      %621 = vmatprep.subr.bf16.mxu0 0
      %622 = vmatpush2.bf16.xpose.msra.mxu0 0
      %623 = vmatprep.subr.bf16.mxu0 0
      %624 = vmatpush2.bf16.xpose.msra.mxu0 0
      %625 = vmatprep.subr.bf16.mxu0 0
      %626 = vmatpush2.bf16.xpose.msra.mxu0 0
      %627 = vmatprep.subr.bf16.mxu0 0
      %628 = vmatpush2.bf16.xpose.msra.mxu0 0
      %629 = vmatprep.subr.bf16.mxu0 0
      %630 = vmatpush2.bf16.xpose.msra.mxu0 0
      %631 = vmatprep.subr.bf16.mxu0 0
      %632 = vmatpush2.bf16.xpose.msra.mxu0 0
      %633 = vmatprep.subr.bf16.mxu0 0
      %634 = vmatpush2.bf16.xpose.msra.mxu0 0
      %635 = vmatprep.subr.bf16.mxu0 0
      %636 = vmatpush2.bf16.xpose.msra.mxu0 0
      %637 = vmatprep.mubr.bf16.mxu0 %v496
      %638 = vmatmul.mubr.bf16.gmra.mxu0 %v495
      %v639 = vpop.f32.mrf.mxu0
      %v640 = vadd.f32 %v591, %v639
      %v641 = vpop.f32.mrf.mxu0
      %v642 = vpop.f32.mrf.mxu0
      %v643 = vadd.f32 %v594, %v642
      %v644 = vpop.f32.mrf.mxu0
      %645 = vmatprep.mubr.bf16.mxu0 %v504
      %646 = vmatmul.mubr.bf16.gmra.mxu0 %v503
      %v647 = vpop.f32.mrf.mxu0
      %v648 = vadd.f32 %v599, %v647
      %v649 = vpop.f32.mrf.mxu0
      %v650 = vpop.f32.mrf.mxu0
      %v651 = vadd.f32 %v602, %v650
      %v652 = vpop.f32.mrf.mxu0
      %653 = vdwg.mxu0
      %654 = vmatprep.subr.bf16.mxu0 0
      %655 = vmatpush1.bf16.xpose.msra.mxu0 0
      %656 = vmatprep.subr.bf16.mxu0 0
      %657 = vmatpush1.bf16.xpose.msra.mxu0 0
      %658 = vmatprep.subr.bf16.mxu0 0
      %659 = vmatpush1.bf16.xpose.msra.mxu0 0
      %660 = vmatprep.subr.bf16.mxu0 0
      %661 = vmatpush1.bf16.xpose.msra.mxu0 0
      %662 = vmatprep.subr.bf16.mxu0 0
      %663 = vmatpush1.bf16.xpose.msra.mxu0 0
      %664 = vmatprep.subr.bf16.mxu0 0
      %665 = vmatpush1.bf16.xpose.msra.mxu0 0
      %666 = vmatprep.subr.bf16.mxu0 0
      %667 = vmatpush1.bf16.xpose.msra.mxu0 0
      %668 = vmatprep.subr.bf16.mxu0 %v506
      %669 = vmatpush1.bf16.xpose.msra.mxu0 %v505
      %670 = vmatprep.subr.bf16.mxu0 0
      %671 = vmatpush2.bf16.xpose.msra.mxu0 0
      %672 = vmatprep.subr.bf16.mxu0 0
      %673 = vmatpush2.bf16.xpose.msra.mxu0 0
      %674 = vmatprep.subr.bf16.mxu0 0
      %675 = vmatpush2.bf16.xpose.msra.mxu0 0
      %676 = vmatprep.subr.bf16.mxu0 0
      %677 = vmatpush2.bf16.xpose.msra.mxu0 0
      %678 = vmatprep.subr.bf16.mxu0 0
      %679 = vmatpush2.bf16.xpose.msra.mxu0 0
      %680 = vmatprep.subr.bf16.mxu0 0
      %681 = vmatpush2.bf16.xpose.msra.mxu0 0
      %682 = vmatprep.subr.bf16.mxu0 0
      %683 = vmatpush2.bf16.xpose.msra.mxu0 0
      %684 = vmatprep.subr.bf16.mxu0 0
      %685 = vmatpush2.bf16.xpose.msra.mxu0 0
      %686 = vmatprep.mubr.bf16.mxu0 %v498
      %687 = vmatmul.mubr.bf16.gmra.mxu0 %v497
      %v688 = vpop.f32.mrf.mxu0
      %v689 = vadd.f32 %v640, %v688
      %v690 = vpop.f32.mrf.mxu0
      %v691 = vpop.f32.mrf.mxu0
      %v692 = vadd.f32 %v643, %v691
      %v693 = vpop.f32.mrf.mxu0
      %694 = vmatprep.mubr.bf16.mxu0 %v506
      %695 = vmatmul.mubr.bf16.gmra.mxu0 %v505
      %v696 = vpop.f32.mrf.mxu0
      %v697 = vadd.f32 %v648, %v696
      %v698 = vpop.f32.mrf.mxu0
      %v699 = vpop.f32.mrf.mxu0
      %v700 = vadd.f32 %v651, %v699
      %v701 = vpop.f32.mrf.mxu0
      %702 = vdwg.mxu0
      %vm703 = vcmask 64512
      %704 = vst.msk [vmem:[%s208] sm:$0xff] %vm703, %v689
      %705 = vst.msk [vmem:[%s208 + $0x8] sm:$0xff] %vm703, %v692
      %706 = vst.msk [vmem:[%s208 + $0x10] sm:$0xff] %vm703, %v697
      %vm707 = vcmask 57344
      %708 = vst.msk [vmem:[%s208 + $0x18] sm:$0x1] %vm707, %v700
      %p709 = scmp.lt.s32.totalorder %s18, 1
      %s710 = scalar_select %p709, %s18, 1
      %p711 = scmp.lt.s32.totalorder %s19, 0
      %s712 = scalar_select %p711, %s19, 0
      %s713 = smul.addr %s712, 4
      %s714 = smul.addr %s710, 4
      %s715 = sadd.s32 %s713, %s714
      %s716 = smul.addr %s715, 8
      %s717 = scalar_lea.vmem %s3, %s716
      // Predicated region
      $region33: #{glore_unit_pallas.2} parent=31 // pred_check
        %p718 = pneg %p116
      $region34: #{glore_unit_pallas.2} parent=31 // pred_check_branch
        %720 = sbr.rel (%p718) target = $region36
      $region35: #{glore_unit_pallas.2} parent=31 // pred_region
        _
      $region36: #{glore_unit_pallas.2} parent=31 // pred_fallthru
        _
    $region32: #{glore_unit_pallas.2} parent=5 // pred_fallthru
      _
    %p721 = scmp.le.s32.totalorder 2, %s9
    // Predicated region
    $region37: #{glore_unit_pallas.2} parent=5 // pred_check
      %p722 = pneg %p721
    $region38: #{glore_unit_pallas.2} parent=5 // pred_check_branch
      %724 = sbr.rel (%p722) target = $region40
    $region39: #{glore_unit_pallas.2} parent=5 // pred_region
      %s725 = ssub.s32 %s9, 2
      // Predicated region
      $region41: #{glore_unit_pallas.2} parent=39 // pred_check
        %p726 = pneg %p122
      $region42: #{glore_unit_pallas.2} parent=39 // pred_check_branch
        %728 = sbr.rel (%p726) target = $region44
      $region43: #{glore_unit_pallas.2} parent=39 // pred_region
        %p729 = scmp.lt.s32.totalorder %s20, 1
        %s730 = scalar_select %p729, %s20, 1
        %p731 = scmp.lt.s32.totalorder %s21, 0
        %s732 = scalar_select %p731, %s21, 0
        %s733 = smul.addr %s732, 4
        %s734 = smul.addr %s730, 4
        %s735 = sadd.s32 %s733, %s734
        %s736 = smul.addr %s735, 8
        %s737 = scalar_lea.vmem %s3, %s736
      $region44: #{glore_unit_pallas.2} parent=39 // pred_fallthru
        _
    $region40: #{glore_unit_pallas.2} parent=5 // pred_fallthru
      _
  $region6: #{glore_unit_pallas.2} parent=0 // loop_footer
    %s13 = sadd.s32 1, %s9
  $region7: #{glore_unit_pallas.2} parent=0 // loop_footer_branch
    %8 = sbr.rel target = $region3
  $region8: #{glore_unit_pallas.2} parent=0 // loop_exit
    _

// kernel: glore_unit_pallas.3
$region0: #{glore_unit_pallas.3}
  #allocation0 [shape = 'u32[]', space=smem, size = 0x4, offset = 0x4, fixed_abs, tag = 'smem constant byte address 0x4 - core index']
  #allocation1 [shape = 'u32[144,128]{1,0:T(1,128)}', space=vmem, size = 0x12000, scoped, tag = 'internal scratch']
  %s0 = inlined_call_operand.vmem [shape: f32[2,16,1024], index: 0, kind: input, shape index: {}]
  %s1 = inlined_call_operand.vmem [shape: bf16[8,16], index: 1, kind: input, shape index: {}]
  %s2 = inlined_call_operand.vmem [shape: f32[8,1], index: 2, kind: input, shape index: {}]
  %s3 = inlined_call_operand.vmem [shape: bf16[2,16,8], index: 3, kind: input, shape index: {}]
  %s4 = inlined_call_operand.vmem [shape: f32[16,1], index: 4, kind: input, shape index: {}]
  %s5 = inlined_call_operand.vmem [shape: f32[2,16,1024], index: 5, kind: output, shape index: {}]
  %s6 = sld [smem:[#allocation0]]
  $region53: #{glore_unit_pallas.3} parent=0
    _
  %s8 = ssub.s32 1, %s6
  %s9 = scalar_select 0, %s8, %s6
  loop: start=0, step=1, limit=4
  $region2: #{glore_unit_pallas.3} parent=0 // loop_pre_header
    _
  $region3: #{glore_unit_pallas.3} parent=0 // loop_header
    %s11 = sphi 0, %s15
    %p12 = scmp.ge.s32.totalorder %s11, 4
    %s18 = sphi 0, %s30
    %s19 = sphi 0, %s26
    %s20 = sphi 0, %s18
    %s21 = sphi 0, %s19
    %s22 = sphi 0, %s20
    %s23 = sphi 0, %s21
    %s35 = sphi 0, %s37
    %s38 = sphi 0, %s35
    %s39 = sphi 0, %s38
    %s55 = sphi 0, %s39
    %s59 = sphi 0, %s59
    %s61 = sphi 0, %s59
    %s62 = sphi 0, %s61
    %s76 = sphi 0, %s62
    %s80 = sphi 0, %s80
    %s82 = sphi 0, %s80
    %s83 = sphi 0, %s82
    %s97 = sphi 0, %s83
    %s103 = sphi 0, %s105
    %s106 = sphi 0, %s103
    %s107 = sphi 0, %s106
    %s123 = sphi 0, %s107
    %s127 = sphi 0, %s127
    %s129 = sphi 0, %s127
    %s130 = sphi 0, %s129
    %s144 = sphi 0, %s130
    %s152 = sphi 0, %s154
    %s155 = sphi 0, %s152
    %s156 = sphi 0, %s155
    %s172 = sphi 0, %s156
  $region4: #{glore_unit_pallas.3} parent=0 // loop_header_branch
    %14 = sbr.rel (%p12) target = $region8
  $region5: #{glore_unit_pallas.3} parent=0 // loop_body
    %s16 = ssub.s32 %s11, 1
    %s17 = ssub.s32 %s11, 2
    %s24 = sadd.s32 1, %s19
    %p25 = scmp.ge.s32.totalorder %s24, 1
    %s26 = scalar_select %p25, 0, %s24
    %s27 = sadd.s32 1, %s18
    %s28 = scalar_select %p25, %s27, %s18
    %p29 = scmp.ge.s32.totalorder %s28, 2
    %s30 = scalar_select %p29, 0, %s28
    %s31 = ssub.s32 %s18, %s30
    %s32 = ssub.s32 %s19, %s26
    %s33 = sor.u32 %s31, %s32
    %p34 = scmp.eq.s32.totalorder %s33, 0
    %s36 = sadd.s32 %s35, 1
    %s37 = scalar_select %p34, %s35, %s36
    %p40 = pneg %p34
    %p41 = scmp.eq.s32.totalorder %s11, 1
    %p42 = por %p40, %p41
    %p43 = scmp.ne.s32.totalorder %s35, %s38
    %p44 = scmp.eq.s32.totalorder %s11, 0
    %p45 = por %p43, %p44
    %p46 = scmp.ne.s32.totalorder %s35, %s38
    %p47 = scmp.eq.s32.totalorder %s16, 1
    %p48 = por %p46, %p47
    %p49 = scmp.ne.s32.totalorder %s38, %s39
    %p50 = scmp.eq.s32.totalorder %s16, 0
    %p51 = por %p49, %p50
    %p52 = scmp.ne.s32.totalorder %s38, %s39
    %p53 = scmp.eq.s32.totalorder %s17, 1
    %p54 = por %p52, %p53
    %p56 = scmp.ne.s32.totalorder %s39, %s55
    %p57 = scmp.eq.s32.totalorder %s17, 0
    %p58 = por %p56, %p57
    %s60 = sadd.s32 %s59, 1
    %p63 = scmp.eq.s32.totalorder %s11, 1
    %p64 = scmp.ne.s32.totalorder %s59, %s61
    %p65 = scmp.eq.s32.totalorder %s11, 0
    %p66 = por %p64, %p65
    %p67 = scmp.ne.s32.totalorder %s59, %s61
    %p68 = scmp.eq.s32.totalorder %s16, 1
    %p69 = por %p67, %p68
    %p70 = scmp.ne.s32.totalorder %s61, %s62
    %p71 = scmp.eq.s32.totalorder %s16, 0
    %p72 = por %p70, %p71
    %p73 = scmp.ne.s32.totalorder %s61, %s62
    %p74 = scmp.eq.s32.totalorder %s17, 1
    %p75 = por %p73, %p74
    %p77 = scmp.ne.s32.totalorder %s62, %s76
    %p78 = scmp.eq.s32.totalorder %s17, 0
    %p79 = por %p77, %p78
    %s81 = sadd.s32 %s80, 1
    %p84 = scmp.eq.s32.totalorder %s11, 1
    %p85 = scmp.ne.s32.totalorder %s80, %s82
    %p86 = scmp.eq.s32.totalorder %s11, 0
    %p87 = por %p85, %p86
    %p88 = scmp.ne.s32.totalorder %s80, %s82
    %p89 = scmp.eq.s32.totalorder %s16, 1
    %p90 = por %p88, %p89
    %p91 = scmp.ne.s32.totalorder %s82, %s83
    %p92 = scmp.eq.s32.totalorder %s16, 0
    %p93 = por %p91, %p92
    %p94 = scmp.ne.s32.totalorder %s82, %s83
    %p95 = scmp.eq.s32.totalorder %s17, 1
    %p96 = por %p94, %p95
    %p98 = scmp.ne.s32.totalorder %s83, %s97
    %p99 = scmp.eq.s32.totalorder %s17, 0
    %p100 = por %p98, %p99
    %s101 = ssub.s32 %s18, %s30
    %p102 = scmp.eq.s32.totalorder %s101, 0
    %s104 = sadd.s32 %s103, 1
    %s105 = scalar_select %p102, %s103, %s104
    %p108 = pneg %p102
    %p109 = scmp.eq.s32.totalorder %s11, 1
    %p110 = por %p108, %p109
    %p111 = scmp.ne.s32.totalorder %s103, %s106
    %p112 = scmp.eq.s32.totalorder %s11, 0
    %p113 = por %p111, %p112
    %p114 = scmp.ne.s32.totalorder %s103, %s106
    %p115 = scmp.eq.s32.totalorder %s16, 1
    %p116 = por %p114, %p115
    %p117 = scmp.ne.s32.totalorder %s106, %s107
    %p118 = scmp.eq.s32.totalorder %s16, 0
    %p119 = por %p117, %p118
    %p120 = scmp.ne.s32.totalorder %s106, %s107
    %p121 = scmp.eq.s32.totalorder %s17, 1
    %p122 = por %p120, %p121
    %p124 = scmp.ne.s32.totalorder %s107, %s123
    %p125 = scmp.eq.s32.totalorder %s17, 0
    %p126 = por %p124, %p125
    %s128 = sadd.s32 %s127, 1
    %p131 = scmp.eq.s32.totalorder %s11, 1
    %p132 = scmp.ne.s32.totalorder %s127, %s129
    %p133 = scmp.eq.s32.totalorder %s11, 0
    %p134 = por %p132, %p133
    %p135 = scmp.ne.s32.totalorder %s127, %s129
    %p136 = scmp.eq.s32.totalorder %s16, 1
    %p137 = por %p135, %p136
    %p138 = scmp.ne.s32.totalorder %s129, %s130
    %p139 = scmp.eq.s32.totalorder %s16, 0
    %p140 = por %p138, %p139
    %p141 = scmp.ne.s32.totalorder %s129, %s130
    %p142 = scmp.eq.s32.totalorder %s17, 1
    %p143 = por %p141, %p142
    %p145 = scmp.ne.s32.totalorder %s130, %s144
    %p146 = scmp.eq.s32.totalorder %s17, 0
    %p147 = por %p145, %p146
    %s148 = ssub.s32 %s18, %s30
    %s149 = ssub.s32 %s19, %s26
    %s150 = sor.u32 %s148, %s149
    %p151 = scmp.eq.s32.totalorder %s150, 0
    %s153 = sadd.s32 %s152, 1
    %s154 = scalar_select %p151, %s152, %s153
    %p157 = pneg %p151
    %p158 = scmp.eq.s32.totalorder %s11, 1
    %p159 = por %p157, %p158
    %p160 = scmp.ne.s32.totalorder %s152, %s155
    %p161 = scmp.eq.s32.totalorder %s11, 0
    %p162 = por %p160, %p161
    %p163 = scmp.ne.s32.totalorder %s152, %s155
    %p164 = scmp.eq.s32.totalorder %s16, 1
    %p165 = por %p163, %p164
    %p166 = scmp.ne.s32.totalorder %s155, %s156
    %p167 = scmp.eq.s32.totalorder %s16, 0
    %p168 = por %p166, %p167
    %p169 = scmp.ne.s32.totalorder %s155, %s156
    %p170 = scmp.eq.s32.totalorder %s17, 1
    %p171 = por %p169, %p170
    %p173 = scmp.ne.s32.totalorder %s156, %s172
    %p174 = scmp.eq.s32.totalorder %s17, 0
    %p175 = por %p173, %p174
    %p176 = scmp.le.s32.totalorder 1, %s11
    %p177 = scmp.lt.s32.totalorder %s11, 3
    %p178 = pnand %p176, %p177
    %p179 = pneg %p178
    // Predicated region
    $region9: #{glore_unit_pallas.3} parent=5 // pred_check
      _
    $region10: #{glore_unit_pallas.3} parent=5 // pred_check_branch
      %181 = sbr.rel (%p178) target = $region12
    $region11: #{glore_unit_pallas.3} parent=5 // pred_region
      %s182 = ssub.s32 %s11, 1
      // Predicated region
      $region13: #{glore_unit_pallas.3} parent=11 // pred_check
        %p183 = pneg %p72
      $region14: #{glore_unit_pallas.3} parent=11 // pred_check_branch
        %185 = sbr.rel (%p183) target = $region16
      $region15: #{glore_unit_pallas.3} parent=11 // pred_region
        _
      $region16: #{glore_unit_pallas.3} parent=11 // pred_fallthru
        _
      // Predicated region
      $region17: #{glore_unit_pallas.3} parent=11 // pred_check
        %p186 = pneg %p93
      $region18: #{glore_unit_pallas.3} parent=11 // pred_check_branch
        %188 = sbr.rel (%p186) target = $region20
      $region19: #{glore_unit_pallas.3} parent=11 // pred_region
        _
      $region20: #{glore_unit_pallas.3} parent=11 // pred_fallthru
        _
      // Predicated region
      $region21: #{glore_unit_pallas.3} parent=11 // pred_check
        %p189 = pneg %p140
      $region22: #{glore_unit_pallas.3} parent=11 // pred_check_branch
        %191 = sbr.rel (%p189) target = $region24
      $region23: #{glore_unit_pallas.3} parent=11 // pred_region
        _
      $region24: #{glore_unit_pallas.3} parent=11 // pred_fallthru
        _
    $region12: #{glore_unit_pallas.3} parent=5 // pred_fallthru
      _
    %p192 = scmp.lt.s32.totalorder %s11, 2
    // Predicated region
    $region25: #{glore_unit_pallas.3} parent=5 // pred_check
      %p193 = pneg %p192
    $region26: #{glore_unit_pallas.3} parent=5 // pred_check_branch
      %195 = sbr.rel (%p193) target = $region28
    $region27: #{glore_unit_pallas.3} parent=5 // pred_region
      // Predicated region
      $region29: #{glore_unit_pallas.3} parent=27 // pred_check
        %p196 = pneg %p45
      $region30: #{glore_unit_pallas.3} parent=27 // pred_check_branch
        %198 = sbr.rel (%p196) target = $region32
      $region31: #{glore_unit_pallas.3} parent=27 // pred_region
        %s199 = smul.u32 8, %s19
        %p200 = scmp.lt.s32.totalorder %s18, 1
        %s201 = scalar_select %p200, %s18, 1
        %p202 = scmp.lt.s32.totalorder %s199, 7
        %s203 = scalar_select %p202, %s199, 7
        %s204 = smul.addr %s201, 16
        %s205 = sadd.s32 %s203, %s204
        %s206 = smul.addr %s205, 8
        %s207 = scalar_lea.vmem %s0, %s206
        %s208 = smul.u32 8, %s19
      $region32: #{glore_unit_pallas.3} parent=27 // pred_fallthru
        _
      // Predicated region
      $region33: #{glore_unit_pallas.3} parent=27 // pred_check
        %p209 = pneg %p113
      $region34: #{glore_unit_pallas.3} parent=27 // pred_check_branch
        %211 = sbr.rel (%p209) target = $region36
      $region35: #{glore_unit_pallas.3} parent=27 // pred_region
        %p212 = scmp.lt.s32.totalorder %s18, 1
        %s213 = scalar_select %p212, %s18, 1
        %s214 = smul.addr %s213, 2
        %s215 = smul.addr %s214, 4
        %s216 = scalar_lea.vmem %s3, %s215
      $region36: #{glore_unit_pallas.3} parent=27 // pred_fallthru
        _
    $region28: #{glore_unit_pallas.3} parent=5 // pred_fallthru
      _
    %p217 = scmp.le.s32.totalorder 1, %s11
    %p218 = scmp.lt.s32.totalorder %s11, 3
    %p219 = pnand %p217, %p218
    %p220 = pneg %p219
    // Predicated region
    $region37: #{glore_unit_pallas.3} parent=5 // pred_check
      _
    $region38: #{glore_unit_pallas.3} parent=5 // pred_check_branch
      %222 = sbr.rel (%p219) target = $region40
    $region39: #{glore_unit_pallas.3} parent=5 // pred_region
      %s223 = ssub.s32 %s11, 1
      %s224 = smul.u32 8, %s21
      %p225 = scmp.lt.s32.totalorder %s20, 1
      %s226 = scalar_select %p225, %s20, 1
      %p227 = scmp.lt.s32.totalorder %s224, 7
      %s228 = scalar_select %p227, %s224, 7
      %s229 = smul.addr %s226, 16
      %s230 = sadd.s32 %s228, %s229
      %s231 = smul.addr %s230, 8
      %s232 = scalar_lea.vmem %s0, %s231
      %p233 = pneg %p51
      %p234 = pneg %p48
      %p235 = pneg %p72
      %p236 = pneg %p69
      %p237 = pneg %p93
      %p238 = pneg %p90
      %p239 = scmp.lt.s32.totalorder %s20, 1
      %s240 = scalar_select %p239, %s20, 1
      %s241 = smul.addr %s240, 2
      %s242 = smul.addr %s241, 4
      %s243 = scalar_lea.vmem %s3, %s242
      %p244 = pneg %p119
      %p245 = pneg %p116
      %p246 = pneg %p140
      %p247 = pneg %p137
      %p248 = pneg %p168
      %p249 = pneg %p165
      %s250 = smul.u32 8, %s21
      %p251 = scmp.lt.s32.totalorder %s20, 1
      %s252 = scalar_select %p251, %s20, 1
      %p253 = scmp.lt.s32.totalorder %s250, 7
      %s254 = scalar_select %p253, %s250, 7
      %s255 = smul.addr %s252, 16
      %s256 = sadd.s32 %s254, %s255
      %s257 = smul.addr %s256, 8
      %s258 = scalar_lea.vmem %s5, %s257
      %s259 = smul.u32 8, %s21
      %p260 = scmp.lt.s32.totalorder %s20, 1
      %s261 = scalar_select %p260, %s20, 1
      %p262 = scmp.lt.s32.totalorder %s259, 7
      %s263 = scalar_select %p262, %s259, 7
      %s264 = smul.addr %s261, 16
      %s265 = sadd.s32 %s263, %s264
      %s266 = smul.addr %s265, 8
      %s267 = scalar_lea.vmem %s0, %s266
      %s268 = smul.u32 8, %s21
      %p269 = scmp.lt.s32.totalorder %s20, 1
      %s270 = scalar_select %p269, %s20, 1
      %s271 = smul.addr %s270, 2
      %s272 = smul.addr %s271, 4
      %s273 = scalar_lea.vmem %s3, %s272
      %s274 = smul.u32 8, %s21
      %p275 = scmp.lt.s32.totalorder %s20, 1
      %s276 = scalar_select %p275, %s20, 1
      %p277 = scmp.lt.s32.totalorder %s274, 7
      %s278 = scalar_select %p277, %s274, 7
      %s279 = smul.addr %s276, 16
      %s280 = sadd.s32 %s278, %s279
      %s281 = smul.addr %s280, 8
      %s282 = scalar_lea.vmem %s5, %s281
      %s283 = smul.u32 8, %s21
      %v285 = vld [vmem:[%s267] sm:$0xff]
      %v286 = vld [vmem:[%s267 + $0x8] sm:$0xff]
      %v287 = vld [vmem:[%s267 + $0x10] sm:$0xff]
      %v288 = vld [vmem:[%s267 + $0x18] sm:$0xff]
      %v289 = vld [vmem:[%s267 + $0x20] sm:$0xff]
      %v290 = vld [vmem:[%s267 + $0x28] sm:$0xff]
      %v291 = vld [vmem:[%s267 + $0x30] sm:$0xff]
      %v292 = vld [vmem:[%s267 + $0x38] sm:$0xff]
      %v293 = vld [vmem:[%s267 + $0x40] sm:$0xff]
      %v294 = vld [vmem:[%s267 + $0x48] sm:$0xff]
      %v295 = vld [vmem:[%s267 + $0x50] sm:$0xff]
      %v296 = vld [vmem:[%s267 + $0x58] sm:$0xff]
      %v297 = vld [vmem:[%s267 + $0x60] sm:$0xff]
      %v298 = vld [vmem:[%s267 + $0x68] sm:$0xff]
      %v299 = vld [vmem:[%s267 + $0x70] sm:$0xff]
      %v300 = vld [vmem:[%s267 + $0x78] sm:$0xff]
      %v301 = vld [vmem:[%s1] sm:$0xf]
      %v302 = vpack.c.bf16 %v293, %v285
      %v303 = vpack.c.bf16 %v294, %v286
      %v304 = vpack.c.bf16 %v295, %v287
      %v305 = vpack.c.bf16 %v296, %v288
      %v306 = vpack.c.bf16 %v297, %v289
      %v307 = vpack.c.bf16 %v298, %v290
      %v308 = vpack.c.bf16 %v299, %v291
      %v309 = vpack.c.bf16 %v300, %v292
      %v310 = vld [vmem:[%s2] sm:$0xff]
      %312 = vset.pattern.permute.xlu0 0
      %313 = vperm.xlu0 %312, %v310
      %v314 = vpop.permute.xlu0 %313
      %vm316 = vcmask 130048
      %v318 = vsel %vm316, %v301, 0
      %320 = vmatprep.subr.bf16.mxu0 0
      %321 = vmatpush1.bf16.msra.mxu0 0
      %322 = vmatprep.subr.bf16.mxu0 0
      %323 = vmatpush1.bf16.msra.mxu0 0
      %324 = vmatprep.subr.bf16.mxu0 0
      %325 = vmatpush1.bf16.msra.mxu0 0
      %326 = vmatprep.subr.bf16.mxu0 0
      %327 = vmatpush1.bf16.msra.mxu0 0
      %328 = vmatprep.subr.bf16.mxu0 0
      %329 = vmatpush1.bf16.msra.mxu0 0
      %330 = vmatprep.subr.bf16.mxu0 0
      %331 = vmatpush1.bf16.msra.mxu0 0
      %332 = vmatprep.subr.bf16.mxu0 0
      %333 = vmatpush1.bf16.msra.mxu0 0
      %334 = vmatprep.subr.bf16.mxu0 %v303
      %335 = vmatpush1.bf16.msra.mxu0 %v302
      %336 = vmatprep.subr.bf16.mxu0 0
      %337 = vmatpush2.bf16.msra.mxu0 0
      %338 = vmatprep.subr.bf16.mxu0 0
      %339 = vmatpush2.bf16.msra.mxu0 0
      %340 = vmatprep.subr.bf16.mxu0 0
      %341 = vmatpush2.bf16.msra.mxu0 0
      %342 = vmatprep.subr.bf16.mxu0 0
      %343 = vmatpush2.bf16.msra.mxu0 0
      %344 = vmatprep.subr.bf16.mxu0 0
      %345 = vmatpush2.bf16.msra.mxu0 0
      %346 = vmatprep.subr.bf16.mxu0 0
      %347 = vmatpush2.bf16.msra.mxu0 0
      %348 = vmatprep.subr.bf16.mxu0 0
      %349 = vmatpush2.bf16.msra.mxu0 0
      %350 = vmatprep.subr.bf16.mxu0 0
      %351 = vmatpush2.bf16.msra.mxu0 0
      %352 = vmatprep.mubr.bf16.mxu0 0
      %353 = vmatmul.mubr.bf16.gmra.mxu0 %v318
      %v354 = vpop.f32.mrf.mxu0
      %v355 = vadd.f32 %v314, %v354
      %v356 = vpop.f32.mrf.mxu0
      %v357 = vadd.f32 %v314, %v356
      %v358 = vpop.f32.mrf.mxu0
      %v359 = vpop.f32.mrf.mxu0
      %360 = vdwg.mxu0
      %361 = vmatprep.subr.bf16.mxu0 0
      %362 = vmatpush1.bf16.msra.mxu0 0
      %363 = vmatprep.subr.bf16.mxu0 0
      %364 = vmatpush1.bf16.msra.mxu0 0
      %365 = vmatprep.subr.bf16.mxu0 0
      %366 = vmatpush1.bf16.msra.mxu0 0
      %367 = vmatprep.subr.bf16.mxu0 0
      %368 = vmatpush1.bf16.msra.mxu0 0
      %369 = vmatprep.subr.bf16.mxu0 0
      %370 = vmatpush1.bf16.msra.mxu0 0
      %371 = vmatprep.subr.bf16.mxu0 0
      %372 = vmatpush1.bf16.msra.mxu0 0
      %373 = vmatprep.subr.bf16.mxu0 0
      %374 = vmatpush1.bf16.msra.mxu0 0
      %375 = vmatprep.subr.bf16.mxu0 %v305
      %376 = vmatpush1.bf16.msra.mxu0 %v304
      %377 = vmatprep.subr.bf16.mxu0 0
      %378 = vmatpush2.bf16.msra.mxu0 0
      %379 = vmatprep.subr.bf16.mxu0 0
      %380 = vmatpush2.bf16.msra.mxu0 0
      %381 = vmatprep.subr.bf16.mxu0 0
      %382 = vmatpush2.bf16.msra.mxu0 0
      %383 = vmatprep.subr.bf16.mxu0 0
      %384 = vmatpush2.bf16.msra.mxu0 0
      %385 = vmatprep.subr.bf16.mxu0 0
      %386 = vmatpush2.bf16.msra.mxu0 0
      %387 = vmatprep.subr.bf16.mxu0 0
      %388 = vmatpush2.bf16.msra.mxu0 0
      %389 = vmatprep.subr.bf16.mxu0 0
      %390 = vmatpush2.bf16.msra.mxu0 0
      %391 = vmatprep.subr.bf16.mxu0 0
      %392 = vmatpush2.bf16.msra.mxu0 0
      %393 = vmatprep.mubr.bf16.mxu0 0
      %394 = vmatmul.mubr.bf16.gmra.mxu0 %v318
      %v395 = vpop.f32.mrf.mxu0
      %v396 = vadd.f32 %v314, %v395
      %v397 = vpop.f32.mrf.mxu0
      %v398 = vadd.f32 %v314, %v397
      %v399 = vpop.f32.mrf.mxu0
      %v400 = vpop.f32.mrf.mxu0
      %401 = vdwg.mxu0
      %402 = vmatprep.subr.bf16.mxu0 0
      %403 = vmatpush1.bf16.msra.mxu0 0
      %404 = vmatprep.subr.bf16.mxu0 0
      %405 = vmatpush1.bf16.msra.mxu0 0
      %406 = vmatprep.subr.bf16.mxu0 0
      %407 = vmatpush1.bf16.msra.mxu0 0
      %408 = vmatprep.subr.bf16.mxu0 0
      %409 = vmatpush1.bf16.msra.mxu0 0
      %410 = vmatprep.subr.bf16.mxu0 0
      %411 = vmatpush1.bf16.msra.mxu0 0
      %412 = vmatprep.subr.bf16.mxu0 0
      %413 = vmatpush1.bf16.msra.mxu0 0
      %414 = vmatprep.subr.bf16.mxu0 0
      %415 = vmatpush1.bf16.msra.mxu0 0
      %416 = vmatprep.subr.bf16.mxu0 %v307
      %417 = vmatpush1.bf16.msra.mxu0 %v306
      %418 = vmatprep.subr.bf16.mxu0 0
      %419 = vmatpush2.bf16.msra.mxu0 0
      %420 = vmatprep.subr.bf16.mxu0 0
      %421 = vmatpush2.bf16.msra.mxu0 0
      %422 = vmatprep.subr.bf16.mxu0 0
      %423 = vmatpush2.bf16.msra.mxu0 0
      %424 = vmatprep.subr.bf16.mxu0 0
      %425 = vmatpush2.bf16.msra.mxu0 0
      %426 = vmatprep.subr.bf16.mxu0 0
      %427 = vmatpush2.bf16.msra.mxu0 0
      %428 = vmatprep.subr.bf16.mxu0 0
      %429 = vmatpush2.bf16.msra.mxu0 0
      %430 = vmatprep.subr.bf16.mxu0 0
      %431 = vmatpush2.bf16.msra.mxu0 0
      %432 = vmatprep.subr.bf16.mxu0 0
      %433 = vmatpush2.bf16.msra.mxu0 0
      %434 = vmatprep.mubr.bf16.mxu0 0
      %435 = vmatmul.mubr.bf16.gmra.mxu0 %v318
      %v436 = vpop.f32.mrf.mxu0
      %v437 = vadd.f32 %v314, %v436
      %v438 = vpop.f32.mrf.mxu0
      %v439 = vadd.f32 %v314, %v438
      %v440 = vpop.f32.mrf.mxu0
      %v441 = vpop.f32.mrf.mxu0
      %442 = vdwg.mxu0
      %443 = vmatprep.subr.bf16.mxu0 0
      %444 = vmatpush1.bf16.msra.mxu0 0
      %445 = vmatprep.subr.bf16.mxu0 0
      %446 = vmatpush1.bf16.msra.mxu0 0
      %447 = vmatprep.subr.bf16.mxu0 0
      %448 = vmatpush1.bf16.msra.mxu0 0
      %449 = vmatprep.subr.bf16.mxu0 0
      %450 = vmatpush1.bf16.msra.mxu0 0
      %451 = vmatprep.subr.bf16.mxu0 0
      %452 = vmatpush1.bf16.msra.mxu0 0
      %453 = vmatprep.subr.bf16.mxu0 0
      %454 = vmatpush1.bf16.msra.mxu0 0
      %455 = vmatprep.subr.bf16.mxu0 0
      %456 = vmatpush1.bf16.msra.mxu0 0
      %457 = vmatprep.subr.bf16.mxu0 %v309
      %458 = vmatpush1.bf16.msra.mxu0 %v308
      %459 = vmatprep.subr.bf16.mxu0 0
      %460 = vmatpush2.bf16.msra.mxu0 0
      %461 = vmatprep.subr.bf16.mxu0 0
      %462 = vmatpush2.bf16.msra.mxu0 0
      %463 = vmatprep.subr.bf16.mxu0 0
      %464 = vmatpush2.bf16.msra.mxu0 0
      %465 = vmatprep.subr.bf16.mxu0 0
      %466 = vmatpush2.bf16.msra.mxu0 0
      %467 = vmatprep.subr.bf16.mxu0 0
      %468 = vmatpush2.bf16.msra.mxu0 0
      %469 = vmatprep.subr.bf16.mxu0 0
      %470 = vmatpush2.bf16.msra.mxu0 0
      %471 = vmatprep.subr.bf16.mxu0 0
      %472 = vmatpush2.bf16.msra.mxu0 0
      %473 = vmatprep.subr.bf16.mxu0 0
      %474 = vmatpush2.bf16.msra.mxu0 0
      %475 = vmatprep.mubr.bf16.mxu0 0
      %476 = vmatmul.mubr.bf16.gmra.mxu0 %v318
      %v477 = vpop.f32.mrf.mxu0
      %v478 = vadd.f32 %v314, %v477
      %v479 = vpop.f32.mrf.mxu0
      %v480 = vadd.f32 %v314, %v479
      %v481 = vpop.f32.mrf.mxu0
      %v482 = vpop.f32.mrf.mxu0
      %483 = vdwg.mxu0
      %v484 = vld [vmem:[%s273] sm:$0xf]
      %v485 = vld [vmem:[%s273 + $0x4] sm:$0xf]
      %v486 = vpack.c.bf16 %v355, %v355
      %v487 = vpack.c.bf16 %v357, %v357
      %v488 = vpack.c.bf16 %v396, %v396
      %v489 = vpack.c.bf16 %v398, %v398
      %v490 = vpack.c.bf16 %v437, %v437
      %v491 = vpack.c.bf16 %v439, %v439
      %v492 = vpack.c.bf16 %v478, %v478
      %v493 = vpack.c.bf16 %v480, %v480
      %v496 = vunpack.c.l.b16 %v484
      %v497 = vunpack.c.l.b16 %v485
      %v498 = vpack.c.b16 %v497, %v496
      %vm499 = vcmask 64512
      %v501 = vsel %vm499, %v498, 0
      %vm503 = vcmask 1043456
      %v505 = vsel %vm503, %v486, 0
      %v508 = vsel %vm503, %v487, 0
      %v511 = vsel %vm503, %v488, 0
      %v514 = vsel %vm503, %v489, 0
      %v517 = vsel %vm503, %v490, 0
      %v520 = vsel %vm503, %v491, 0
      %v523 = vsel %vm503, %v492, 0
      %v526 = vsel %vm503, %v493, 0
      %528 = vmatprep.subr.bf16.mxu0 0
      %529 = vmatpush1.bf16.msra.mxu0 0
      %530 = vmatprep.subr.bf16.mxu0 0
      %531 = vmatpush1.bf16.msra.mxu0 0
      %532 = vmatprep.subr.bf16.mxu0 0
      %533 = vmatpush1.bf16.msra.mxu0 0
      %534 = vmatprep.subr.bf16.mxu0 0
      %535 = vmatpush1.bf16.msra.mxu0 0
      %536 = vmatprep.subr.bf16.mxu0 0
      %537 = vmatpush1.bf16.msra.mxu0 0
      %538 = vmatprep.subr.bf16.mxu0 0
      %539 = vmatpush1.bf16.msra.mxu0 0
      %540 = vmatprep.subr.bf16.mxu0 0
      %541 = vmatpush1.bf16.msra.mxu0 0
      %542 = vmatprep.subr.bf16.mxu0 %v508
      %543 = vmatpush1.bf16.msra.mxu0 %v505
      %544 = vmatprep.subr.bf16.mxu0 0
      %545 = vmatpush2.bf16.msra.mxu0 0
      %546 = vmatprep.subr.bf16.mxu0 0
      %547 = vmatpush2.bf16.msra.mxu0 0
      %548 = vmatprep.subr.bf16.mxu0 0
      %549 = vmatpush2.bf16.msra.mxu0 0
      %550 = vmatprep.subr.bf16.mxu0 0
      %551 = vmatpush2.bf16.msra.mxu0 0
      %552 = vmatprep.subr.bf16.mxu0 0
      %553 = vmatpush2.bf16.msra.mxu0 0
      %554 = vmatprep.subr.bf16.mxu0 0
      %555 = vmatpush2.bf16.msra.mxu0 0
      %556 = vmatprep.subr.bf16.mxu0 0
      %557 = vmatpush2.bf16.msra.mxu0 0
      %558 = vmatprep.subr.bf16.mxu0 0
      %559 = vmatpush2.bf16.msra.mxu0 0
      %560 = vmatprep.mubr.bf16.mxu0 0
      %561 = vmatmul.mubr.bf16.gmra.mxu0 %v501
      %v562 = vpop.f32.mrf.mxu0
      %v563 = vadd.f32 0.0, %v562
      %v564 = vpop.f32.mrf.mxu0
      %v565 = vadd.f32 0.0, %v564
      %v566 = vpop.f32.mrf.mxu0
      %v567 = vadd.f32 0.0, %v566
      %v568 = vpop.f32.mrf.mxu0
      %v569 = vadd.f32 0.0, %v568
      %570 = vdwg.mxu0
      %571 = vmatprep.subr.bf16.mxu0 0
      %572 = vmatpush1.bf16.msra.mxu0 0
      %573 = vmatprep.subr.bf16.mxu0 0
      %574 = vmatpush1.bf16.msra.mxu0 0
      %575 = vmatprep.subr.bf16.mxu0 0
      %576 = vmatpush1.bf16.msra.mxu0 0
      %577 = vmatprep.subr.bf16.mxu0 0
      %578 = vmatpush1.bf16.msra.mxu0 0
      %579 = vmatprep.subr.bf16.mxu0 0
      %580 = vmatpush1.bf16.msra.mxu0 0
      %581 = vmatprep.subr.bf16.mxu0 0
      %582 = vmatpush1.bf16.msra.mxu0 0
      %583 = vmatprep.subr.bf16.mxu0 0
      %584 = vmatpush1.bf16.msra.mxu0 0
      %585 = vmatprep.subr.bf16.mxu0 %v514
      %586 = vmatpush1.bf16.msra.mxu0 %v511
      %587 = vmatprep.subr.bf16.mxu0 0
      %588 = vmatpush2.bf16.msra.mxu0 0
      %589 = vmatprep.subr.bf16.mxu0 0
      %590 = vmatpush2.bf16.msra.mxu0 0
      %591 = vmatprep.subr.bf16.mxu0 0
      %592 = vmatpush2.bf16.msra.mxu0 0
      %593 = vmatprep.subr.bf16.mxu0 0
      %594 = vmatpush2.bf16.msra.mxu0 0
      %595 = vmatprep.subr.bf16.mxu0 0
      %596 = vmatpush2.bf16.msra.mxu0 0
      %597 = vmatprep.subr.bf16.mxu0 0
      %598 = vmatpush2.bf16.msra.mxu0 0
      %599 = vmatprep.subr.bf16.mxu0 0
      %600 = vmatpush2.bf16.msra.mxu0 0
      %601 = vmatprep.subr.bf16.mxu0 0
      %602 = vmatpush2.bf16.msra.mxu0 0
      %603 = vmatprep.mubr.bf16.mxu0 0
      %604 = vmatmul.mubr.bf16.gmra.mxu0 %v501
      %v605 = vpop.f32.mrf.mxu0
      %v606 = vadd.f32 0.0, %v605
      %v607 = vpop.f32.mrf.mxu0
      %v608 = vadd.f32 0.0, %v607
      %v609 = vpop.f32.mrf.mxu0
      %v610 = vadd.f32 0.0, %v609
      %v611 = vpop.f32.mrf.mxu0
      %v612 = vadd.f32 0.0, %v611
      %613 = vdwg.mxu0
      %614 = vmatprep.subr.bf16.mxu0 0
      %615 = vmatpush1.bf16.msra.mxu0 0
      %616 = vmatprep.subr.bf16.mxu0 0
      %617 = vmatpush1.bf16.msra.mxu0 0
      %618 = vmatprep.subr.bf16.mxu0 0
      %619 = vmatpush1.bf16.msra.mxu0 0
      %620 = vmatprep.subr.bf16.mxu0 0
      %621 = vmatpush1.bf16.msra.mxu0 0
      %622 = vmatprep.subr.bf16.mxu0 0
      %623 = vmatpush1.bf16.msra.mxu0 0
      %624 = vmatprep.subr.bf16.mxu0 0
      %625 = vmatpush1.bf16.msra.mxu0 0
      %626 = vmatprep.subr.bf16.mxu0 0
      %627 = vmatpush1.bf16.msra.mxu0 0
      %628 = vmatprep.subr.bf16.mxu0 %v520
      %629 = vmatpush1.bf16.msra.mxu0 %v517
      %630 = vmatprep.subr.bf16.mxu0 0
      %631 = vmatpush2.bf16.msra.mxu0 0
      %632 = vmatprep.subr.bf16.mxu0 0
      %633 = vmatpush2.bf16.msra.mxu0 0
      %634 = vmatprep.subr.bf16.mxu0 0
      %635 = vmatpush2.bf16.msra.mxu0 0
      %636 = vmatprep.subr.bf16.mxu0 0
      %637 = vmatpush2.bf16.msra.mxu0 0
      %638 = vmatprep.subr.bf16.mxu0 0
      %639 = vmatpush2.bf16.msra.mxu0 0
      %640 = vmatprep.subr.bf16.mxu0 0
      %641 = vmatpush2.bf16.msra.mxu0 0
      %642 = vmatprep.subr.bf16.mxu0 0
      %643 = vmatpush2.bf16.msra.mxu0 0
      %644 = vmatprep.subr.bf16.mxu0 0
      %645 = vmatpush2.bf16.msra.mxu0 0
      %646 = vmatprep.mubr.bf16.mxu0 0
      %647 = vmatmul.mubr.bf16.gmra.mxu0 %v501
      %v648 = vpop.f32.mrf.mxu0
      %v649 = vadd.f32 0.0, %v648
      %v650 = vpop.f32.mrf.mxu0
      %v651 = vadd.f32 0.0, %v650
      %v652 = vpop.f32.mrf.mxu0
      %v653 = vadd.f32 0.0, %v652
      %v654 = vpop.f32.mrf.mxu0
      %v655 = vadd.f32 0.0, %v654
      %656 = vdwg.mxu0
      %657 = vmatprep.subr.bf16.mxu0 0
      %658 = vmatpush1.bf16.msra.mxu0 0
      %659 = vmatprep.subr.bf16.mxu0 0
      %660 = vmatpush1.bf16.msra.mxu0 0
      %661 = vmatprep.subr.bf16.mxu0 0
      %662 = vmatpush1.bf16.msra.mxu0 0
      %663 = vmatprep.subr.bf16.mxu0 0
      %664 = vmatpush1.bf16.msra.mxu0 0
      %665 = vmatprep.subr.bf16.mxu0 0
      %666 = vmatpush1.bf16.msra.mxu0 0
      %667 = vmatprep.subr.bf16.mxu0 0
      %668 = vmatpush1.bf16.msra.mxu0 0
      %669 = vmatprep.subr.bf16.mxu0 0
      %670 = vmatpush1.bf16.msra.mxu0 0
      %671 = vmatprep.subr.bf16.mxu0 %v526
      %672 = vmatpush1.bf16.msra.mxu0 %v523
      %673 = vmatprep.subr.bf16.mxu0 0
      %674 = vmatpush2.bf16.msra.mxu0 0
      %675 = vmatprep.subr.bf16.mxu0 0
      %676 = vmatpush2.bf16.msra.mxu0 0
      %677 = vmatprep.subr.bf16.mxu0 0
      %678 = vmatpush2.bf16.msra.mxu0 0
      %679 = vmatprep.subr.bf16.mxu0 0
      %680 = vmatpush2.bf16.msra.mxu0 0
      %681 = vmatprep.subr.bf16.mxu0 0
      %682 = vmatpush2.bf16.msra.mxu0 0
      %683 = vmatprep.subr.bf16.mxu0 0
      %684 = vmatpush2.bf16.msra.mxu0 0
      %685 = vmatprep.subr.bf16.mxu0 0
      %686 = vmatpush2.bf16.msra.mxu0 0
      %687 = vmatprep.subr.bf16.mxu0 0
      %688 = vmatpush2.bf16.msra.mxu0 0
      %689 = vmatprep.mubr.bf16.mxu0 0
      %690 = vmatmul.mubr.bf16.gmra.mxu0 %v501
      %v691 = vpop.f32.mrf.mxu0
      %v692 = vadd.f32 0.0, %v691
      %v693 = vpop.f32.mrf.mxu0
      %v694 = vadd.f32 0.0, %v693
      %v695 = vpop.f32.mrf.mxu0
      %v696 = vadd.f32 0.0, %v695
      %v697 = vpop.f32.mrf.mxu0
      %v698 = vadd.f32 0.0, %v697
      %699 = vdwg.mxu0
      %v700 = vadd.f32 %v285, %v563
      %v701 = vadd.f32 %v286, %v565
      %v702 = vadd.f32 %v287, %v606
      %v703 = vadd.f32 %v288, %v608
      %v704 = vadd.f32 %v289, %v649
      %v705 = vadd.f32 %v290, %v651
      %v706 = vadd.f32 %v291, %v692
      %v707 = vadd.f32 %v292, %v694
      %v708 = vadd.f32 %v293, %v567
      %v709 = vadd.f32 %v294, %v569
      %v710 = vadd.f32 %v295, %v610
      %v711 = vadd.f32 %v296, %v612
      %v712 = vadd.f32 %v297, %v653
      %v713 = vadd.f32 %v298, %v655
      %v714 = vadd.f32 %v299, %v696
      %v715 = vadd.f32 %v300, %v698
      %v716 = vld [vmem:[%s4] sm:$0xff]
      %v717 = vld [vmem:[%s4 + $0x8] sm:$0xff]
      %719 = vset.pattern.permute.xlu0 0
      %720 = vperm.xlu0 %719, %v716
      %v721 = vpop.permute.xlu0 %720
      %724 = vset.pattern.permute.xlu0 0
      %725 = vperm.xlu0 %724, %v717
      %v726 = vpop.permute.xlu0 %725
      %v728 = vadd.f32 %v700, %v721
      %v729 = vadd.f32 %v701, %v721
      %v730 = vadd.f32 %v702, %v721
      %v731 = vadd.f32 %v703, %v721
      %v732 = vadd.f32 %v704, %v721
      %v733 = vadd.f32 %v705, %v721
      %v734 = vadd.f32 %v706, %v721
      %v735 = vadd.f32 %v707, %v721
      %v736 = vadd.f32 %v708, %v726
      %v737 = vadd.f32 %v709, %v726
      %v738 = vadd.f32 %v710, %v726
      %v739 = vadd.f32 %v711, %v726
      %v740 = vadd.f32 %v712, %v726
      %v741 = vadd.f32 %v713, %v726
      %v742 = vadd.f32 %v714, %v726
      %v743 = vadd.f32 %v715, %v726
      %744 = vst [vmem:[%s282] sm:$0xff] %v728
      %745 = vst [vmem:[%s282 + $0x8] sm:$0xff] %v729
      %746 = vst [vmem:[%s282 + $0x10] sm:$0xff] %v730
      %747 = vst [vmem:[%s282 + $0x18] sm:$0xff] %v731
      %748 = vst [vmem:[%s282 + $0x20] sm:$0xff] %v732
      %749 = vst [vmem:[%s282 + $0x28] sm:$0xff] %v733
      %750 = vst [vmem:[%s282 + $0x30] sm:$0xff] %v734
      %751 = vst [vmem:[%s282 + $0x38] sm:$0xff] %v735
      %752 = vst [vmem:[%s282 + $0x40] sm:$0xff] %v736
      %753 = vst [vmem:[%s282 + $0x48] sm:$0xff] %v737
      %754 = vst [vmem:[%s282 + $0x50] sm:$0xff] %v738
      %755 = vst [vmem:[%s282 + $0x58] sm:$0xff] %v739
      %756 = vst [vmem:[%s282 + $0x60] sm:$0xff] %v740
      %757 = vst [vmem:[%s282 + $0x68] sm:$0xff] %v741
      %758 = vst [vmem:[%s282 + $0x70] sm:$0xff] %v742
      %759 = vst [vmem:[%s282 + $0x78] sm:$0xff] %v743
      %s760 = smul.u32 8, %s21
      %p761 = scmp.lt.s32.totalorder %s20, 1
      %s762 = scalar_select %p761, %s20, 1
      %p763 = scmp.lt.s32.totalorder %s760, 7
      %s764 = scalar_select %p763, %s760, 7
      %s765 = smul.addr %s762, 16
      %s766 = sadd.s32 %s764, %s765
      %s767 = smul.addr %s766, 8
      %s768 = scalar_lea.vmem %s5, %s767
      // Predicated region
      $region41: #{glore_unit_pallas.3} parent=39 // pred_check
        %p769 = pneg %p165
      $region42: #{glore_unit_pallas.3} parent=39 // pred_check_branch
        %771 = sbr.rel (%p769) target = $region44
      $region43: #{glore_unit_pallas.3} parent=39 // pred_region
        %s772 = smul.u32 8, %s21
      $region44: #{glore_unit_pallas.3} parent=39 // pred_fallthru
        _
    $region40: #{glore_unit_pallas.3} parent=5 // pred_fallthru
      _
    %p773 = scmp.le.s32.totalorder 2, %s11
    // Predicated region
    $region45: #{glore_unit_pallas.3} parent=5 // pred_check
      %p774 = pneg %p773
    $region46: #{glore_unit_pallas.3} parent=5 // pred_check_branch
      %776 = sbr.rel (%p774) target = $region48
    $region47: #{glore_unit_pallas.3} parent=5 // pred_region
      %s777 = ssub.s32 %s11, 2
      // Predicated region
      $region49: #{glore_unit_pallas.3} parent=47 // pred_check
        %p778 = pneg %p171
      $region50: #{glore_unit_pallas.3} parent=47 // pred_check_branch
        %780 = sbr.rel (%p778) target = $region52
      $region51: #{glore_unit_pallas.3} parent=47 // pred_region
        %s781 = smul.u32 8, %s23
        %p782 = scmp.lt.s32.totalorder %s22, 1
        %s783 = scalar_select %p782, %s22, 1
        %p784 = scmp.lt.s32.totalorder %s781, 7
        %s785 = scalar_select %p784, %s781, 7
        %s786 = smul.addr %s783, 16
        %s787 = sadd.s32 %s785, %s786
        %s788 = smul.addr %s787, 8
        %s789 = scalar_lea.vmem %s5, %s788
      $region52: #{glore_unit_pallas.3} parent=47 // pred_fallthru
        _
    $region48: #{glore_unit_pallas.3} parent=5 // pred_fallthru
      _
  $region6: #{glore_unit_pallas.3} parent=0 // loop_footer
    %s15 = sadd.s32 1, %s11
  $region7: #{glore_unit_pallas.3} parent=0 // loop_footer_branch
    %10 = sbr.rel target = $region3
  $region8: #{glore_unit_pallas.3} parent=0 // loop_exit
    _

</llo_original>
